<compile_context>
chip_gen: v7x
topology: tpu7x:2x2x1
jax: 0.10.0
libtpu: 0.0.40
codegen_flags: <defaults>
</compile_context>

<pallas_src>
import jax
import jax.numpy as jnp
from jax import lax
from jax.experimental import pallas as pl
from jax.experimental.pallas import tpu as pltpu

# ----------------------------- configuration --------------------------------
B = 2                      # batch
S = 16                     # sequence length == linformer max_seq_length
H = 32                     # hidden_size
NUM_HEADS = 4              # num_attention_heads
NUM_KV_HEADS = 2           # num_key_value_heads
HEAD_DIM = H // NUM_HEADS  # 8
GROUPS = NUM_HEADS // NUM_KV_HEADS   # 2
K_RATIO = 0.25
LIN_K = max(1, int(S * K_RATIO))     # 4
SCALING = HEAD_DIM ** (-0.5)
ROPE_THETA = 10000.0
HALF = HEAD_DIM // 2

# fused projection lane layout (padded to one full 128-lane vreg width):
#   [ Q (32) | K (16) | V (16) | rot(Q) (32) | rot(K) (16) | zero pad (16) ]
Q_COL = 0
K_COL = NUM_HEADS * HEAD_DIM                    # 32
V_COL = K_COL + NUM_KV_HEADS * HEAD_DIM         # 48
QKV_W = V_COL + NUM_KV_HEADS * HEAD_DIM         # 64  (main [Q|K|V] block width)
FUSED_W = 128                                   # padded fused projection width


# --------------------------- fully fused kernel ------------------------------
def _fused_attn_kernel(x_ref, wb_ref, cs_ref, eft_ref, wo_ref, o_ref, attn_ref):
    rows = x_ref.shape[1]                                  # bps * S
    x = x_ref[0]                                           # (rows, H)

    w = wb_ref[0:H, :]                                     # (H, 128) fused weights
    bias = wb_ref[H:H + 1, :]                              # (1, 128) fused bias row
    qkv = jnp.dot(x, w, preferred_element_type=jnp.float32) + bias   # (rows, 128)

    cm = cs_ref[0:rows, :]                                 # (rows, 64) cos mult (1 on V lanes)
    sm = cs_ref[rows:2 * rows, :]                          # (rows, 64) sin mult (0 on V lanes)
    # RoPE as pure elementwise math: rotate_half lives in weight columns 64:128.
    roped = qkv[:, 0:QKV_W] * cm + qkv[:, QKV_W:FUSED_W] * sm        # (rows, 64)

    et = eft_ref[0:LIN_K, :]                               # (k, S)  E^T
    ft = eft_ref[LIN_K:2 * LIN_K, :]                       # (k, S)  F^T

    bps = rows // S
    for bb in range(bps):                                  # unrolled at trace time
        r0 = bb * S
        kb = roped[r0:r0 + S, K_COL:V_COL]                 # (S, 16): both kv heads
        vb = roped[r0:r0 + S, V_COL:QKV_W]                 # (S, 16)
        pk_all = jnp.dot(et, kb, preferred_element_type=jnp.float32)   # (k, 16)
        pv_all = jnp.dot(ft, vb, preferred_element_type=jnp.float32)   # (k, 16)
        for kv in range(NUM_KV_HEADS):
            heads = [kv * GROUPS + g for g in range(GROUPS)]
            # stack the GQA group's queries along sublanes -> one scores matmul,
            # one softmax, one PV matmul per kv head.
            qg = jnp.concatenate(
                [roped[r0:r0 + S, h * HEAD_DIM:(h + 1) * HEAD_DIM] for h in heads],
                axis=0)                                    # (GROUPS*S, hd)
            pk = pk_all[:, kv * HEAD_DIM:(kv + 1) * HEAD_DIM]          # (k, hd)
            pv = pv_all[:, kv * HEAD_DIM:(kv + 1) * HEAD_DIM]          # (k, hd)
            scores = lax.dot_general(qg, pk, (((1,), (1,)), ((), ())),
                                     preferred_element_type=jnp.float32)  # (GROUPS*S, k)
            # TODO(synk): additive attention_mask path not wired (mask=None inference case).
            scores = scores - jnp.max(scores, axis=-1, keepdims=True)
            ex = jnp.exp(scores)
            probs = ex * pl.reciprocal(jnp.sum(ex, axis=-1, keepdims=True),
                                       approx=False)
            ag = jnp.dot(probs, pv, preferred_element_type=jnp.float32)    # (GROUPS*S, hd)
            # per-head outputs land at static lane offsets of the VMEM scratch;
            # no concatenate, one dense o_proj matmul at the end.
            for g, h in enumerate(heads):
                attn_ref[r0:r0 + S, h * HEAD_DIM:(h + 1) * HEAD_DIM] = ag[g * S:(g + 1) * S, :]

    out = jnp.dot(attn_ref[...], wo_ref[...], preferred_element_type=jnp.float32)
    o_ref[0] = out.astype(o_ref.dtype)                     # (rows, H), lane-dense


# ------------------------------ host wrapper ---------------------------------
def _tensorcores_per_chip():
    try:
        d = jax.devices()[0]
        if d.platform != "tpu":
            return 1
        if "v7" in d.device_kind.lower():
            return 2
    except Exception:
        pass
    return 1


def _rotate_half_cols(w):
    """Columns W' with x @ W' == rotate_half(x @ W), applied per HEAD_DIM block."""
    nh = w.shape[-1] // HEAD_DIM
    parts = []
    for h in range(nh):
        blk = w[..., h * HEAD_DIM:(h + 1) * HEAD_DIM]
        parts.append(jnp.concatenate([-blk[..., HALF:], blk[..., :HALF]], axis=-1))
    return jnp.concatenate(parts, axis=-1)


def linformer_qwen2_attention(hidden_states, cos, sin, p):
    Bb, Ss, Hh = hidden_states.shape
    assert Ss == S and Hh == H

    # ---- one-time host-side parameter transforms (outside the hot kernel) ----
    wq_s, bq_s = p["wq"] * SCALING, p["bq"] * SCALING       # fold 1/sqrt(hd) into Q
    wqkv = jnp.concatenate(
        [wq_s, p["wk"], p["wv"], _rotate_half_cols(wq_s), _rotate_half_cols(p["wk"])],
        axis=1)                                             # (H, 112)
    bqkv = jnp.concatenate(
        [bq_s, p["bk"], p["bv"], _rotate_half_cols(bq_s), _rotate_half_cols(p["bk"])],
        axis=1)                                             # (1, 112)
    lane_pad = FUSED_W - wqkv.shape[1]
    wqkv = jnp.pad(wqkv, ((0, 0), (0, lane_pad)))
    bqkv = jnp.pad(bqkv, ((0, 0), (0, lane_pad)))
    wb = jnp.concatenate([wqkv, bqkv], axis=0)              # (H+1, 128): weight + bias row

    # batches per grid step: collapse batch on single-TC v5e/v6e (one step,
    # full sublane utilization, no per-step overhead); keep grid=(B,) parallel
    # on dual-TC v7x so the two batches land on the two TensorCores.
    bps = 1 if (_tensorcores_per_chip() >= 2 and Bb > 1) else Bb
    steps = Bb // bps
    rows = bps * Ss

    # cos/sin multipliers tiled lane-dense to the [Q|K|V] layout (1/0 on V lanes),
    # and tiled vertically over the batches handled per grid step.
    cos_row = jnp.concatenate(
        [jnp.tile(cos, (1, NUM_HEADS)), jnp.tile(cos, (1, NUM_KV_HEADS)),
         jnp.ones((Ss, NUM_KV_HEADS * HEAD_DIM), cos.dtype)], axis=1)       # (S, 64)
    sin_row = jnp.concatenate(
        [jnp.tile(sin, (1, NUM_HEADS)), jnp.tile(sin, (1, NUM_KV_HEADS)),
         jnp.zeros((Ss, NUM_KV_HEADS * HEAD_DIM), sin.dtype)], axis=1)      # (S, 64)
    cs = jnp.concatenate([jnp.tile(cos_row, (bps, 1)),
                          jnp.tile(sin_row, (bps, 1))], axis=0)             # (2*rows, 64)

    eft = jnp.concatenate([p["E"][:Ss].T, p["F"][:Ss].T], axis=0)           # (2k, S)

    x = hidden_states.reshape(steps, rows, Hh)

    flops = (2 * Bb * Ss * Hh * FUSED_W                                      # fused QKV(+rot)
             + Bb * 2 * 2 * LIN_K * Ss * (NUM_KV_HEADS * HEAD_DIM)           # E/F projections
             + Bb * NUM_KV_HEADS * 2 * 2 * (GROUPS * Ss) * HEAD_DIM * LIN_K  # scores + PV
             + 2 * Bb * Ss * Hh * Hh)                                        # o_proj
    bytes_accessed = 4 * (2 * Bb * Ss * Hh + wb.size + cs.size + eft.size + p["wo"].size)
    transcendentals = Bb * NUM_HEADS * Ss * LIN_K

    out = pl.pallas_call(
        _fused_attn_kernel,
        out_shape=jax.ShapeDtypeStruct((steps, rows, Hh), hidden_states.dtype),
        grid=(steps,),
        in_specs=[
            pl.BlockSpec((1, rows, Hh), lambda i: (i, 0, 0)),        # hidden_states
            pl.BlockSpec((Hh + 1, FUSED_W), lambda i: (0, 0)),       # fused [W ; b]
            pl.BlockSpec((2 * rows, QKV_W), lambda i: (0, 0)),       # [cos | sin] multipliers
            pl.BlockSpec((2 * LIN_K, Ss), lambda i: (0, 0)),         # [E^T ; F^T]
            pl.BlockSpec((Hh, Hh), lambda i: (0, 0)),                # o_proj weight
        ],
        out_specs=pl.BlockSpec((1, rows, Hh), lambda i: (i, 0, 0)),  # lane-dense output
        scratch_shapes=[pltpu.VMEM((rows, Hh), jnp.float32)],        # per-head attn slab
        compiler_params=pltpu.CompilerParams(
            dimension_semantics=("parallel",)),
        cost_estimate=pl.CostEstimate(flops=int(flops),
                                      transcendentals=int(transcendentals),
                                      bytes_accessed=int(bytes_accessed)),
    )(x, wb, cs, eft, p["wo"])
    return out.reshape(Bb, Ss, Hh)


# ------------------------------ pure-JAX reference ---------------------------
def _rotate_half(x):
    half = x.shape[-1] // 2
    return jnp.concatenate([-x[..., half:], x[..., :half]], axis=-1)


def reference(hidden_states, cos, sin, p):
    Bb, Ss, Hh = hidden_states.shape
    x = hidden_states.reshape(Bb * Ss, Hh)
    q = (x @ p["wq"] + p["bq"][0]).reshape(Bb, Ss, NUM_HEADS, HEAD_DIM).transpose(0, 2, 1, 3)
    k = (x @ p["wk"] + p["bk"][0]).reshape(Bb, Ss, NUM_KV_HEADS, HEAD_DIM).transpose(0, 2, 1, 3)
    v = (x @ p["wv"] + p["bv"][0]).reshape(Bb, Ss, NUM_KV_HEADS, HEAD_DIM).transpose(0, 2, 1, 3)
    cos4, sin4 = cos[None, None], sin[None, None]
    q = q * cos4 + _rotate_half(q) * sin4
    k = k * cos4 + _rotate_half(k) * sin4
    k = jnp.repeat(k, GROUPS, axis=1)
    v = jnp.repeat(v, GROUPS, axis=1)
    E, Fm = p["E"][:Ss], p["F"][:Ss]
    pk = jnp.einsum("bhsd,sk->bhkd", k, E)
    pv = jnp.einsum("bhsd,sk->bhkd", v, Fm)
    scores = jnp.einsum("bhqd,bhkd->bhqk", q, pk) * SCALING
    probs = jax.nn.softmax(scores, axis=-1)
    attn = jnp.einsum("bhqk,bhkd->bhqd", probs, pv)
    attn = attn.transpose(0, 2, 1, 3).reshape(Bb, Ss, NUM_HEADS * HEAD_DIM)
    return attn @ p["wo"]


# ---------------------------------- main -------------------------------------
if __name__ == "__main__":
    key = jax.random.PRNGKey(0)
    ks = jax.random.split(key, 10)

    hidden_states = jax.random.normal(ks[0], (B, S, H), jnp.float32)

    def init(k, shape, scale=0.1):
        return scale * jax.random.normal(k, shape, jnp.float32)

    params = {
        "wq": init(ks[1], (H, NUM_HEADS * HEAD_DIM)),
        "bq": init(ks[2], (1, NUM_HEADS * HEAD_DIM)),
        "wk": init(ks[3], (H, NUM_KV_HEADS * HEAD_DIM)),
        "bk": init(ks[4], (1, NUM_KV_HEADS * HEAD_DIM)),
        "wv": init(ks[5], (H, NUM_KV_HEADS * HEAD_DIM)),
        "bv": init(ks[6], (1, NUM_KV_HEADS * HEAD_DIM)),
        "wo": init(ks[7], (NUM_HEADS * HEAD_DIM, H)),      # o_proj has bias=False
        "E": init(ks[8], (S, LIN_K)),                      # torch param (1, seq_len, k)
        "F": init(ks[9], (S, LIN_K)),
    }

    # Qwen2-style rotary position embeddings, batch-invariant (S, head_dim)
    inv_freq = 1.0 / (ROPE_THETA ** (jnp.arange(0, HEAD_DIM, 2, dtype=jnp.float32) / HEAD_DIM))
    pos = jnp.arange(S, dtype=jnp.float32)
    freqs = jnp.outer(pos, inv_freq)                        # (S, hd/2)
    emb = jnp.concatenate([freqs, freqs], axis=-1)          # (S, hd)
    cos = jnp.cos(emb)
    sin = jnp.sin(emb)

    out = jax.block_until_ready(linformer_qwen2_attention(hidden_states, cos, sin, params))
    ref = reference(hidden_states, cos, sin, params)

    assert out.shape == (B, S, H)
    max_err = float(jnp.max(jnp.abs(out - ref)))
    assert jnp.allclose(out, ref, atol=1e-4, rtol=1e-4), f"max abs err {max_err}"

    print("KERNEL_OK")
</pallas_src>

<mosaic_0001>
module attributes {stable_mosaic.version = 11 : i64} {
  func.func @_fused_attn_kernel(%arg0: i32, %arg1: memref<1x32x32xf32, #tpu.memory_space<vmem>>, %arg2: memref<33x128xf32, #tpu.memory_space<vmem>>, %arg3: memref<64x64xf32, #tpu.memory_space<vmem>>, %arg4: memref<8x16xf32, #tpu.memory_space<vmem>>, %arg5: memref<32x32xf32, #tpu.memory_space<vmem>>, %arg6: memref<1x32x32xf32, #tpu.memory_space<vmem>>, %arg7: memref<32x32xf32, #tpu.memory_space<vmem>>) attributes {dimension_semantics = [#tpu.dimension_semantics<parallel>], iteration_bounds = array<i64: 1>, scalar_prefetch = 0 : i64, scratch_operands = 1 : i64, tpu.core_type = #tpu.core_type<tc>, window_params = [{transform_indices = @transform_0, window_bounds = array<i64: 1, 32, 32>}, {pipeline_mode = #tpu.pipeline_mode<synchronous>, transform_indices = @transform_1, window_bounds = array<i64: 33, 128>}, {pipeline_mode = #tpu.pipeline_mode<synchronous>, transform_indices = @transform_2, window_bounds = array<i64: 64, 64>}, {pipeline_mode = #tpu.pipeline_mode<synchronous>, transform_indices = @transform_3, window_bounds = array<i64: 8, 16>}, {pipeline_mode = #tpu.pipeline_mode<synchronous>, transform_indices = @transform_4, window_bounds = array<i64: 32, 32>}, {transform_indices = @transform_5, window_bounds = array<i64: 1, 32, 32>}]} {
    %c0 = arith.constant 0 : index
    %c0_0 = arith.constant 0 : index
    %c0_1 = arith.constant 0 : index
    %0 = vector.load %arg1[%c0, %c0_0, %c0_1] : memref<1x32x32xf32, #tpu.memory_space<vmem>>, vector<1x32x32xf32>
    %1 = vector.shape_cast %0 : vector<1x32x32xf32> to vector<32x32xf32>
    %c0_2 = arith.constant 0 : index
    %c0_3 = arith.constant 0 : index
    %2 = vector.load %arg2[%c0_2, %c0_3] : memref<33x128xf32, #tpu.memory_space<vmem>>, vector<32x128xf32>
    %c32 = arith.constant 32 : index
    %c0_4 = arith.constant 0 : index
    %3 = vector.load %arg2[%c32, %c0_4] : memref<33x128xf32, #tpu.memory_space<vmem>>, vector<1x128xf32>
    %cst = arith.constant dense<0.000000e+00> : vector<32x128xf32>
    %4 = tpu.matmul %1, %2, %cst {dimension_numbers = #tpu.dot_dimension_numbers<[1], [0], [0], [1], [0, 0, 1, 1], [], []>} : vector<32x32xf32>, vector<32x128xf32>, vector<32x128xf32> -> vector<32x128xf32>
    %5 = vector.broadcast %3 : vector<1x128xf32> to vector<32x128xf32>
    %6 = arith.addf %4, %5 : vector<32x128xf32>
    %c0_5 = arith.constant 0 : index
    %c0_6 = arith.constant 0 : index
    %7 = vector.load %arg3[%c0_5, %c0_6] : memref<64x64xf32, #tpu.memory_space<vmem>>, vector<32x64xf32>
    %c32_7 = arith.constant 32 : index
    %c0_8 = arith.constant 0 : index
    %8 = vector.load %arg3[%c32_7, %c0_8] : memref<64x64xf32, #tpu.memory_space<vmem>>, vector<32x64xf32>
    %9 = vector.extract_strided_slice %6 {offsets = [0, 0], sizes = [32, 64], strides = [1, 1]} : vector<32x128xf32> to vector<32x64xf32>
    %10 = arith.mulf %9, %7 : vector<32x64xf32>
    %11 = vector.extract_strided_slice %6 {offsets = [0, 64], sizes = [32, 64], strides = [1, 1]} : vector<32x128xf32> to vector<32x64xf32>
    %12 = arith.mulf %11, %8 : vector<32x64xf32>
    %13 = arith.addf %10, %12 : vector<32x64xf32>
    %c0_9 = arith.constant 0 : index
    %c0_10 = arith.constant 0 : index
    %14 = vector.load %arg4[%c0_9, %c0_10] : memref<8x16xf32, #tpu.memory_space<vmem>>, vector<4x16xf32>
    %c4 = arith.constant 4 : index
    %c0_11 = arith.constant 0 : index
    %15 = vector.load %arg4[%c4, %c0_11] : memref<8x16xf32, #tpu.memory_space<vmem>>, vector<4x16xf32>
    %16 = vector.extract_strided_slice %13 {offsets = [0, 32], sizes = [16, 16], strides = [1, 1]} : vector<32x64xf32> to vector<16x16xf32>
    %17 = vector.extract_strided_slice %13 {offsets = [0, 48], sizes = [16, 16], strides = [1, 1]} : vector<32x64xf32> to vector<16x16xf32>
    %cst_12 = arith.constant dense<0.000000e+00> : vector<4x16xf32>
    %18 = tpu.matmul %14, %16, %cst_12 {dimension_numbers = #tpu.dot_dimension_numbers<[1], [0], [0], [1], [0, 0, 1, 1], [], []>} : vector<4x16xf32>, vector<16x16xf32>, vector<4x16xf32> -> vector<4x16xf32>
    %cst_13 = arith.constant dense<0.000000e+00> : vector<4x16xf32>
    %19 = tpu.matmul %15, %17, %cst_13 {dimension_numbers = #tpu.dot_dimension_numbers<[1], [0], [0], [1], [0, 0, 1, 1], [], []>} : vector<4x16xf32>, vector<16x16xf32>, vector<4x16xf32> -> vector<4x16xf32>
    %20 = vector.extract_strided_slice %13 {offsets = [0, 0], sizes = [16, 8], strides = [1, 1]} : vector<32x64xf32> to vector<16x8xf32>
    %21 = vector.extract_strided_slice %13 {offsets = [0, 8], sizes = [16, 8], strides = [1, 1]} : vector<32x64xf32> to vector<16x8xf32>
    %22 = tpu.concatenate %20, %21 in 0 : vector<16x8xf32>, vector<16x8xf32> -> vector<32x8xf32>
    %23 = vector.extract_strided_slice %18 {offsets = [0, 0], sizes = [4, 8], strides = [1, 1]} : vector<4x16xf32> to vector<4x8xf32>
    %24 = vector.extract_strided_slice %19 {offsets = [0, 0], sizes = [4, 8], strides = [1, 1]} : vector<4x16xf32> to vector<4x8xf32>
    %cst_14 = arith.constant dense<0.000000e+00> : vector<32x4xf32>
    %25 = tpu.matmul %22, %23, %cst_14 {dimension_numbers = #tpu.dot_dimension_numbers<[1], [1], [0], [0], [0, 0, 1, 0], [], []>} : vector<32x8xf32>, vector<4x8xf32>, vector<32x4xf32> -> vector<32x4xf32>
    %cst_15 = arith.constant dense<0xFF800000> : vector<32xf32>
    %26 = vector.multi_reduction <maximumf>, %25, %cst_15 [1] : vector<32x4xf32> to vector<32xf32>
    %27 = vector.shape_cast %26 : vector<32xf32> to vector<32x1xf32>
    %28 = vector.broadcast %27 : vector<32x1xf32> to vector<32x4xf32>
    %29 = arith.subf %25, %28 : vector<32x4xf32>
    %30 = math.exp %29 : vector<32x4xf32>
    %cst_16 = arith.constant dense<0.000000e+00> : vector<32xf32>
    %31 = vector.multi_reduction <add>, %30, %cst_16 [1] : vector<32x4xf32> to vector<32xf32>
    %32 = vector.shape_cast %31 : vector<32xf32> to vector<32x1xf32>
    %33 = tpu.reciprocal %32 : vector<32x1xf32> -> vector<32x1xf32>
    %34 = vector.broadcast %33 : vector<32x1xf32> to vector<32x4xf32>
    %35 = arith.mulf %30, %34 : vector<32x4xf32>
    %cst_17 = arith.constant dense<0.000000e+00> : vector<32x8xf32>
    %36 = tpu.matmul %35, %24, %cst_17 {dimension_numbers = #tpu.dot_dimension_numbers<[1], [0], [0], [1], [0, 0, 1, 1], [], []>} : vector<32x4xf32>, vector<4x8xf32>, vector<32x8xf32> -> vector<32x8xf32>
    %37 = vector.extract_strided_slice %36 {offsets = [0, 0], sizes = [16, 8], strides = [1, 1]} : vector<32x8xf32> to vector<16x8xf32>
    %c0_18 = arith.constant 0 : index
    %c0_19 = arith.constant 0 : index
    %38 = vector.load %arg7[%c0_18, %c0_19] : memref<32x32xf32, #tpu.memory_space<vmem>>, vector<16x8xf32>
    tpu.vector_store %arg7[%c0_18, %c0_19], %37 {strides = array<i32>} : memref<32x32xf32, #tpu.memory_space<vmem>>, vector<16x8xf32>,
    %39 = vector.extract_strided_slice %36 {offsets = [16, 0], sizes = [16, 8], strides = [1, 1]} : vector<32x8xf32> to vector<16x8xf32>
    %c0_20 = arith.constant 0 : index
    %c8 = arith.constant 8 : index
    %40 = vector.load %arg7[%c0_20, %c8] : memref<32x32xf32, #tpu.memory_space<vmem>>, vector<16x8xf32>
    tpu.vector_store %arg7[%c0_20, %c8], %39 {strides = array<i32>} : memref<32x32xf32, #tpu.memory_space<vmem>>, vector<16x8xf32>,
    %41 = vector.extract_strided_slice %13 {offsets = [0, 16], sizes = [16, 8], strides = [1, 1]} : vector<32x64xf32> to vector<16x8xf32>
    %42 = vector.extract_strided_slice %13 {offsets = [0, 24], sizes = [16, 8], strides = [1, 1]} : vector<32x64xf32> to vector<16x8xf32>
    %43 = tpu.concatenate %41, %42 in 0 : vector<16x8xf32>, vector<16x8xf32> -> vector<32x8xf32>
    %44 = vector.extract_strided_slice %18 {offsets = [0, 8], sizes = [4, 8], strides = [1, 1]} : vector<4x16xf32> to vector<4x8xf32>
    %45 = vector.extract_strided_slice %19 {offsets = [0, 8], sizes = [4, 8], strides = [1, 1]} : vector<4x16xf32> to vector<4x8xf32>
    %cst_21 = arith.constant dense<0.000000e+00> : vector<32x4xf32>
    %46 = tpu.matmul %43, %44, %cst_21 {dimension_numbers = #tpu.dot_dimension_numbers<[1], [1], [0], [0], [0, 0, 1, 0], [], []>} : vector<32x8xf32>, vector<4x8xf32>, vector<32x4xf32> -> vector<32x4xf32>
    %cst_22 = arith.constant dense<0xFF800000> : vector<32xf32>
    %47 = vector.multi_reduction <maximumf>, %46, %cst_22 [1] : vector<32x4xf32> to vector<32xf32>
    %48 = vector.shape_cast %47 : vector<32xf32> to vector<32x1xf32>
    %49 = vector.broadcast %48 : vector<32x1xf32> to vector<32x4xf32>
    %50 = arith.subf %46, %49 : vector<32x4xf32>
    %51 = math.exp %50 : vector<32x4xf32>
    %cst_23 = arith.constant dense<0.000000e+00> : vector<32xf32>
    %52 = vector.multi_reduction <add>, %51, %cst_23 [1] : vector<32x4xf32> to vector<32xf32>
    %53 = vector.shape_cast %52 : vector<32xf32> to vector<32x1xf32>
    %54 = tpu.reciprocal %53 : vector<32x1xf32> -> vector<32x1xf32>
    %55 = vector.broadcast %54 : vector<32x1xf32> to vector<32x4xf32>
    %56 = arith.mulf %51, %55 : vector<32x4xf32>
    %cst_24 = arith.constant dense<0.000000e+00> : vector<32x8xf32>
    %57 = tpu.matmul %56, %45, %cst_24 {dimension_numbers = #tpu.dot_dimension_numbers<[1], [0], [0], [1], [0, 0, 1, 1], [], []>} : vector<32x4xf32>, vector<4x8xf32>, vector<32x8xf32> -> vector<32x8xf32>
    %58 = vector.extract_strided_slice %57 {offsets = [0, 0], sizes = [16, 8], strides = [1, 1]} : vector<32x8xf32> to vector<16x8xf32>
    %c0_25 = arith.constant 0 : index
    %c16 = arith.constant 16 : index
    %59 = vector.load %arg7[%c0_25, %c16] : memref<32x32xf32, #tpu.memory_space<vmem>>, vector<16x8xf32>
    tpu.vector_store %arg7[%c0_25, %c16], %58 {strides = array<i32>} : memref<32x32xf32, #tpu.memory_space<vmem>>, vector<16x8xf32>,
    %60 = vector.extract_strided_slice %57 {offsets = [16, 0], sizes = [16, 8], strides = [1, 1]} : vector<32x8xf32> to vector<16x8xf32>
    %c0_26 = arith.constant 0 : index
    %c24 = arith.constant 24 : index
    %61 = vector.load %arg7[%c0_26, %c24] : memref<32x32xf32, #tpu.memory_space<vmem>>, vector<16x8xf32>
    tpu.vector_store %arg7[%c0_26, %c24], %60 {strides = array<i32>} : memref<32x32xf32, #tpu.memory_space<vmem>>, vector<16x8xf32>,
    %62 = vector.extract_strided_slice %13 {offsets = [16, 32], sizes = [16, 16], strides = [1, 1]} : vector<32x64xf32> to vector<16x16xf32>
    %63 = vector.extract_strided_slice %13 {offsets = [16, 48], sizes = [16, 16], strides = [1, 1]} : vector<32x64xf32> to vector<16x16xf32>
    %cst_27 = arith.constant dense<0.000000e+00> : vector<4x16xf32>
    %64 = tpu.matmul %14, %62, %cst_27 {dimension_numbers = #tpu.dot_dimension_numbers<[1], [0], [0], [1], [0, 0, 1, 1], [], []>} : vector<4x16xf32>, vector<16x16xf32>, vector<4x16xf32> -> vector<4x16xf32>
    %cst_28 = arith.constant dense<0.000000e+00> : vector<4x16xf32>
    %65 = tpu.matmul %15, %63, %cst_28 {dimension_numbers = #tpu.dot_dimension_numbers<[1], [0], [0], [1], [0, 0, 1, 1], [], []>} : vector<4x16xf32>, vector<16x16xf32>, vector<4x16xf32> -> vector<4x16xf32>
    %66 = vector.extract_strided_slice %13 {offsets = [16, 0], sizes = [16, 8], strides = [1, 1]} : vector<32x64xf32> to vector<16x8xf32>
    %67 = vector.extract_strided_slice %13 {offsets = [16, 8], sizes = [16, 8], strides = [1, 1]} : vector<32x64xf32> to vector<16x8xf32>
    %68 = tpu.concatenate %66, %67 in 0 : vector<16x8xf32>, vector<16x8xf32> -> vector<32x8xf32>
    %69 = vector.extract_strided_slice %64 {offsets = [0, 0], sizes = [4, 8], strides = [1, 1]} : vector<4x16xf32> to vector<4x8xf32>
    %70 = vector.extract_strided_slice %65 {offsets = [0, 0], sizes = [4, 8], strides = [1, 1]} : vector<4x16xf32> to vector<4x8xf32>
    %cst_29 = arith.constant dense<0.000000e+00> : vector<32x4xf32>
    %71 = tpu.matmul %68, %69, %cst_29 {dimension_numbers = #tpu.dot_dimension_numbers<[1], [1], [0], [0], [0, 0, 1, 0], [], []>} : vector<32x8xf32>, vector<4x8xf32>, vector<32x4xf32> -> vector<32x4xf32>
    %cst_30 = arith.constant dense<0xFF800000> : vector<32xf32>
    %72 = vector.multi_reduction <maximumf>, %71, %cst_30 [1] : vector<32x4xf32> to vector<32xf32>
    %73 = vector.shape_cast %72 : vector<32xf32> to vector<32x1xf32>
    %74 = vector.broadcast %73 : vector<32x1xf32> to vector<32x4xf32>
    %75 = arith.subf %71, %74 : vector<32x4xf32>
    %76 = math.exp %75 : vector<32x4xf32>
    %cst_31 = arith.constant dense<0.000000e+00> : vector<32xf32>
    %77 = vector.multi_reduction <add>, %76, %cst_31 [1] : vector<32x4xf32> to vector<32xf32>
    %78 = vector.shape_cast %77 : vector<32xf32> to vector<32x1xf32>
    %79 = tpu.reciprocal %78 : vector<32x1xf32> -> vector<32x1xf32>
    %80 = vector.broadcast %79 : vector<32x1xf32> to vector<32x4xf32>
    %81 = arith.mulf %76, %80 : vector<32x4xf32>
    %cst_32 = arith.constant dense<0.000000e+00> : vector<32x8xf32>
    %82 = tpu.matmul %81, %70, %cst_32 {dimension_numbers = #tpu.dot_dimension_numbers<[1], [0], [0], [1], [0, 0, 1, 1], [], []>} : vector<32x4xf32>, vector<4x8xf32>, vector<32x8xf32> -> vector<32x8xf32>
    %83 = vector.extract_strided_slice %82 {offsets = [0, 0], sizes = [16, 8], strides = [1, 1]} : vector<32x8xf32> to vector<16x8xf32>
    %c16_33 = arith.constant 16 : index
    %c0_34 = arith.constant 0 : index
    %84 = vector.load %arg7[%c16_33, %c0_34] : memref<32x32xf32, #tpu.memory_space<vmem>>, vector<16x8xf32>
    tpu.vector_store %arg7[%c16_33, %c0_34], %83 {strides = array<i32>} : memref<32x32xf32, #tpu.memory_space<vmem>>, vector<16x8xf32>,
    %85 = vector.extract_strided_slice %82 {offsets = [16, 0], sizes = [16, 8], strides = [1, 1]} : vector<32x8xf32> to vector<16x8xf32>
    %c16_35 = arith.constant 16 : index
    %c8_36 = arith.constant 8 : index
    %86 = vector.load %arg7[%c16_35, %c8_36] : memref<32x32xf32, #tpu.memory_space<vmem>>, vector<16x8xf32>
    tpu.vector_store %arg7[%c16_35, %c8_36], %85 {strides = array<i32>} : memref<32x32xf32, #tpu.memory_space<vmem>>, vector<16x8xf32>,
    %87 = vector.extract_strided_slice %13 {offsets = [16, 16], sizes = [16, 8], strides = [1, 1]} : vector<32x64xf32> to vector<16x8xf32>
    %88 = vector.extract_strided_slice %13 {offsets = [16, 24], sizes = [16, 8], strides = [1, 1]} : vector<32x64xf32> to vector<16x8xf32>
    %89 = tpu.concatenate %87, %88 in 0 : vector<16x8xf32>, vector<16x8xf32> -> vector<32x8xf32>
    %90 = vector.extract_strided_slice %64 {offsets = [0, 8], sizes = [4, 8], strides = [1, 1]} : vector<4x16xf32> to vector<4x8xf32>
    %91 = vector.extract_strided_slice %65 {offsets = [0, 8], sizes = [4, 8], strides = [1, 1]} : vector<4x16xf32> to vector<4x8xf32>
    %cst_37 = arith.constant dense<0.000000e+00> : vector<32x4xf32>
    %92 = tpu.matmul %89, %90, %cst_37 {dimension_numbers = #tpu.dot_dimension_numbers<[1], [1], [0], [0], [0, 0, 1, 0], [], []>} : vector<32x8xf32>, vector<4x8xf32>, vector<32x4xf32> -> vector<32x4xf32>
    %cst_38 = arith.constant dense<0xFF800000> : vector<32xf32>
    %93 = vector.multi_reduction <maximumf>, %92, %cst_38 [1] : vector<32x4xf32> to vector<32xf32>
    %94 = vector.shape_cast %93 : vector<32xf32> to vector<32x1xf32>
    %95 = vector.broadcast %94 : vector<32x1xf32> to vector<32x4xf32>
    %96 = arith.subf %92, %95 : vector<32x4xf32>
    %97 = math.exp %96 : vector<32x4xf32>
    %cst_39 = arith.constant dense<0.000000e+00> : vector<32xf32>
    %98 = vector.multi_reduction <add>, %97, %cst_39 [1] : vector<32x4xf32> to vector<32xf32>
    %99 = vector.shape_cast %98 : vector<32xf32> to vector<32x1xf32>
    %100 = tpu.reciprocal %99 : vector<32x1xf32> -> vector<32x1xf32>
    %101 = vector.broadcast %100 : vector<32x1xf32> to vector<32x4xf32>
    %102 = arith.mulf %97, %101 : vector<32x4xf32>
    %cst_40 = arith.constant dense<0.000000e+00> : vector<32x8xf32>
    %103 = tpu.matmul %102, %91, %cst_40 {dimension_numbers = #tpu.dot_dimension_numbers<[1], [0], [0], [1], [0, 0, 1, 1], [], []>} : vector<32x4xf32>, vector<4x8xf32>, vector<32x8xf32> -> vector<32x8xf32>
    %104 = vector.extract_strided_slice %103 {offsets = [0, 0], sizes = [16, 8], strides = [1, 1]} : vector<32x8xf32> to vector<16x8xf32>
    %c16_41 = arith.constant 16 : index
    %c16_42 = arith.constant 16 : index
    %105 = vector.load %arg7[%c16_41, %c16_42] : memref<32x32xf32, #tpu.memory_space<vmem>>, vector<16x8xf32>
    tpu.vector_store %arg7[%c16_41, %c16_42], %104 {strides = array<i32>} : memref<32x32xf32, #tpu.memory_space<vmem>>, vector<16x8xf32>,
    %106 = vector.extract_strided_slice %103 {offsets = [16, 0], sizes = [16, 8], strides = [1, 1]} : vector<32x8xf32> to vector<16x8xf32>
    %c16_43 = arith.constant 16 : index
    %c24_44 = arith.constant 24 : index
    %107 = vector.load %arg7[%c16_43, %c24_44] : memref<32x32xf32, #tpu.memory_space<vmem>>, vector<16x8xf32>
    tpu.vector_store %arg7[%c16_43, %c24_44], %106 {strides = array<i32>} : memref<32x32xf32, #tpu.memory_space<vmem>>, vector<16x8xf32>,
    %c0_45 = arith.constant 0 : index
    %c0_46 = arith.constant 0 : index
    %108 = vector.load %arg7[%c0_45, %c0_46] : memref<32x32xf32, #tpu.memory_space<vmem>>, vector<32x32xf32>
    %c0_47 = arith.constant 0 : index
    %c0_48 = arith.constant 0 : index
    %109 = vector.load %arg5[%c0_47, %c0_48] : memref<32x32xf32, #tpu.memory_space<vmem>>, vector<32x32xf32>
    %cst_49 = arith.constant dense<0.000000e+00> : vector<32x32xf32>
    %110 = tpu.matmul %108, %109, %cst_49 {dimension_numbers = #tpu.dot_dimension_numbers<[1], [0], [0], [1], [0, 0, 1, 1], [], []>} : vector<32x32xf32>, vector<32x32xf32>, vector<32x32xf32> -> vector<32x32xf32>
    %c0_50 = arith.constant 0 : index
    %c0_51 = arith.constant 0 : index
    %c0_52 = arith.constant 0 : index
    %111 = vector.load %arg6[%c0_50, %c0_51, %c0_52] : memref<1x32x32xf32, #tpu.memory_space<vmem>>, vector<1x32x32xf32>
    %112 = vector.shape_cast %111 : vector<1x32x32xf32> to vector<32x32xf32>
    %113 = vector.shape_cast %110 : vector<32x32xf32> to vector<1x32x32xf32>
    tpu.vector_store %arg6[%c0_50, %c0_51, %c0_52], %113 {strides = array<i32>} : memref<1x32x32xf32, #tpu.memory_space<vmem>>, vector<1x32x32xf32>,
    return
  }
  func.func @transform_0(%arg0: i32) -> (i32, i32, i32) {
    %c0_i32 = arith.constant 0 : i32
    %c0_i32_0 = arith.constant 0 : i32
    %c0_i32_1 = arith.constant 0 : i32
    return %arg0, %c0_i32, %c0_i32_0 : i32, i32, i32
  }
  func.func @transform_1(%arg0: i32) -> (i32, i32) {
    %c0_i32 = arith.constant 0 : i32
    %c0_i32_0 = arith.constant 0 : i32
    %c0_i32_1 = arith.constant 0 : i32
    return %c0_i32, %c0_i32_0 : i32, i32
  }
  func.func @transform_2(%arg0: i32) -> (i32, i32) {
    %c0_i32 = arith.constant 0 : i32
    %c0_i32_0 = arith.constant 0 : i32
    %c0_i32_1 = arith.constant 0 : i32
    return %c0_i32, %c0_i32_0 : i32, i32
  }
  func.func @transform_3(%arg0: i32) -> (i32, i32) {
    %c0_i32 = arith.constant 0 : i32
    %c0_i32_0 = arith.constant 0 : i32
    %c0_i32_1 = arith.constant 0 : i32
    return %c0_i32, %c0_i32_0 : i32, i32
  }
  func.func @transform_4(%arg0: i32) -> (i32, i32) {
    %c0_i32 = arith.constant 0 : i32
    %c0_i32_0 = arith.constant 0 : i32
    %c0_i32_1 = arith.constant 0 : i32
    return %c0_i32, %c0_i32_0 : i32, i32
  }
  func.func @transform_5(%arg0: i32) -> (i32, i32, i32) {
    %c0_i32 = arith.constant 0 : i32
    %c0_i32_0 = arith.constant 0 : i32
    %c0_i32_1 = arith.constant 0 : i32
    return %arg0, %c0_i32, %c0_i32_0 : i32, i32, i32
  }
}

</mosaic_0001>

<llo_original>
// kernel: tpu_custom_call.1
$region0: #{tpu_custom_call.1}
  #allocation0 [shape = 'u32[]', space=smem, size = 0x4, offset = 0x4, fixed_abs, tag = 'smem constant byte address 0x4 - core index']
  #allocation1 [shape = 'u32[144,128]{1,0:T(1,128)}', space=vmem, size = 0x12000, scoped, tag = 'internal scratch']
  #allocation2 [shape = 'f32[32,32]{1,0:T(8,128)}', space=vmem, size = 0x4000, scoped, tag = 'scratch operand']
  %s0 = inlined_call_operand.hbm [shape: f32[1,32,32], index: 0, kind: input, shape index: {}]
  %s1 = inlined_call_operand.hbm [shape: f32[33,128], index: 1, kind: input, shape index: {}]
  %s2 = inlined_call_operand.hbm [shape: f32[64,64], index: 2, kind: input, shape index: {}]
  %s3 = inlined_call_operand.vmem [shape: f32[8,16], index: 3, kind: input, shape index: {}]
  %s4 = inlined_call_operand.hbm [shape: f32[32,32], index: 4, kind: input, shape index: {}]
  %s5 = inlined_call_operand.hbm [shape: f32[1,32,32], index: 5, kind: output, shape index: {}]
  %s6 = sld [smem:[#allocation0]]
  $region46: #{tpu_custom_call.1} parent=0
    _
  %s8 = ssub.s32 1, %s6
  %s9 = scalar_select 0, %s8, %s6
  $region1: #{tpu_custom_call.1} parent=0
    #allocation3 [shape = 'u8[16384]{0}', space=vmem, size = 0x4000, scoped, tag = 'input window, operand 0, single buffered']
    #allocation4 [shape = 's32[1]{0}', space=sflag, size = 0x4, scoped, tag = 'scoped memory for tpu_custom_call.1']
    #allocation5 [shape = 's32[1]{0}', space=sflag, size = 0x4, scoped, tag = 'scoped memory for tpu_custom_call.1']
    #allocation6 [shape = 'u8[20480]{0}', space=vmem, size = 0x5000, scoped, tag = 'input window, operand 1, single buffered']
    #allocation7 [shape = 's32[1]{0}', space=sflag, size = 0x4, scoped, tag = 'scoped memory for tpu_custom_call.1']
    #allocation8 [shape = 'u8[32768]{0}', space=vmem, size = 0x8000, scoped, tag = 'input window, operand 2, single buffered']
    #allocation9 [shape = 'u8[16384]{0}', space=vmem, size = 0x4000, scoped, tag = 'input window, operand 4, single buffered']
    #allocation10 [shape = 's32[1]{0}', space=sflag, size = 0x4, scoped, tag = 'scoped memory for tpu_custom_call.1']
    #allocation11 [shape = 'u8[16384]{0}', space=vmem, size = 0x4000, scoped, tag = 'output window, operand 0, single buffered']
    %10 = vsyncpa [#allocation4], 0
    %11 = vsyncpa [#allocation7], 0
    %12 = vsyncpa [#allocation10], 0
    %13 = vsyncpa [#allocation5], 0
    // Predicated region
    $region2: #{tpu_custom_call.1} parent=1 // pred_check
      _
    $region3: #{tpu_custom_call.1} parent=1 // pred_check_branch
      %15 = sbr.rel (0) target = $region5
    $region4: #{tpu_custom_call.1} parent=1 // pred_region
      %s17 = ssub.s32 512, 512
      %18 = vsyncadd [#allocation4], %s17
      %s19 = sshll.u32 [#allocation3], 4
      %s20 = int_to_ptr.vmem [resolvable:$true] %s19
      %25 = dma.hbm_to_vmem [thread:$0]  %s0, 512, %s20, [#allocation4], 128, 128, 8
    $region5: #{tpu_custom_call.1} parent=1 // pred_fallthru
      _
    // Predicated region
    $region6: #{tpu_custom_call.1} parent=1 // pred_check
      _
    $region7: #{tpu_custom_call.1} parent=1 // pred_check_branch
      %27 = sbr.rel (0) target = $region9
    $region8: #{tpu_custom_call.1} parent=1 // pred_region
      %s29 = ssub.s32 640, 640
      %30 = vsyncadd [#allocation7], %s29
      %s31 = sshll.u32 [#allocation6], 4
      %s32 = int_to_ptr.vmem [resolvable:$true] %s31
      %37 = dma.hbm_to_vmem [thread:$0]  %s1, 640, %s32, [#allocation7], 128, 128, 8
    $region9: #{tpu_custom_call.1} parent=1 // pred_fallthru
      _
    // Predicated region
    $region10: #{tpu_custom_call.1} parent=1 // pred_check
      _
    $region11: #{tpu_custom_call.1} parent=1 // pred_check_branch
      %39 = sbr.rel (0) target = $region13
    $region12: #{tpu_custom_call.1} parent=1 // pred_region
      %s41 = ssub.s32 1024, 1024
      %42 = vsyncadd [#allocation7], %s41
      %s43 = sshll.u32 [#allocation8], 4
      %s44 = int_to_ptr.vmem [resolvable:$true] %s43
      %49 = dma.hbm_to_vmem [thread:$0]  %s2, 1024, %s44, [#allocation7], 128, 128, 8
    $region13: #{tpu_custom_call.1} parent=1 // pred_fallthru
      _
    // Predicated region
    $region14: #{tpu_custom_call.1} parent=1 // pred_check
      _
    $region15: #{tpu_custom_call.1} parent=1 // pred_check_branch
      %51 = sbr.rel (0) target = $region17
    $region16: #{tpu_custom_call.1} parent=1 // pred_region
      _
    $region17: #{tpu_custom_call.1} parent=1 // pred_fallthru
      _
    // Predicated region
    $region18: #{tpu_custom_call.1} parent=1 // pred_check
      _
    $region19: #{tpu_custom_call.1} parent=1 // pred_check_branch
      %53 = sbr.rel (0) target = $region21
    $region20: #{tpu_custom_call.1} parent=1 // pred_region
      %s55 = ssub.s32 512, 512
      %56 = vsyncadd [#allocation10], %s55
      %s57 = sshll.u32 [#allocation9], 4
      %s58 = int_to_ptr.vmem [resolvable:$true] %s57
      %63 = dma.hbm_to_vmem [thread:$0]  %s4, 512, %s58, [#allocation10], 128, 128, 8
    $region21: #{tpu_custom_call.1} parent=1 // pred_fallthru
      _
    // Predicated region
    $region22: #{tpu_custom_call.1} parent=1 // pred_check
      _
    $region23: #{tpu_custom_call.1} parent=1 // pred_check_branch
      %65 = sbr.rel (0) target = $region25
    $region24: #{tpu_custom_call.1} parent=1 // pred_region
      %66 = dma.done [#allocation4], 512
    $region25: #{tpu_custom_call.1} parent=1 // pred_fallthru
      _
    // Predicated region
    $region26: #{tpu_custom_call.1} parent=1 // pred_check
      _
    $region27: #{tpu_custom_call.1} parent=1 // pred_check_branch
      %68 = sbr.rel (0) target = $region29
    $region28: #{tpu_custom_call.1} parent=1 // pred_region
      %69 = dma.done [#allocation7], 640
    $region29: #{tpu_custom_call.1} parent=1 // pred_fallthru
      _
    // Predicated region
    $region30: #{tpu_custom_call.1} parent=1 // pred_check
      _
    $region31: #{tpu_custom_call.1} parent=1 // pred_check_branch
      %71 = sbr.rel (0) target = $region33
    $region32: #{tpu_custom_call.1} parent=1 // pred_region
      %72 = dma.done [#allocation7], 1024
    $region33: #{tpu_custom_call.1} parent=1 // pred_fallthru
      _
    // Predicated region
    $region34: #{tpu_custom_call.1} parent=1 // pred_check
      _
    $region35: #{tpu_custom_call.1} parent=1 // pred_check_branch
      %74 = sbr.rel (0) target = $region37
    $region36: #{tpu_custom_call.1} parent=1 // pred_region
      %75 = dma.done [#allocation10], 512
    $region37: #{tpu_custom_call.1} parent=1 // pred_fallthru
      _
    %v76 = vld [vmem:[#allocation3] sm:$0xff]
    %v77 = vld [vmem:[#allocation3 + $0x8] sm:$0xff]
    %v78 = vld [vmem:[#allocation3 + $0x10] sm:$0xff]
    %v79 = vld [vmem:[#allocation3 + $0x18] sm:$0xff]
    %v80 = vld [vmem:[#allocation6] sm:$0xff]
    %v81 = vld [vmem:[#allocation6 + $0x8] sm:$0xff]
    %v82 = vld [vmem:[#allocation6 + $0x10] sm:$0xff]
    %v83 = vld [vmem:[#allocation6 + $0x18] sm:$0xff]
    %v84 = vld [vmem:[#allocation6 + $0x20] sm:$0x1]
    %v85 = vlaneseq
    %v86 = vshrl.u32 %v85, 7
    %v87 = vsub.s32 0, %v86
    %v88 = vrot.slane %v84, %v87
    %vm89 = vcmask 261120
    %v91 = vsel %vm89, %v76, 0
    %v94 = vsel %vm89, %v77, 0
    %v97 = vsel %vm89, %v78, 0
    %v100 = vsel %vm89, %v79, 0
    %102 = vmatprep.subr.mxu0 0.0
    %103 = vmatpush1.msra.mxu0 %v80
    %104 = vmatprep.subr.mxu0 0.0
    %105 = vmatpush1.msra.mxu0 %v81
    %106 = vmatprep.subr.mxu0 0.0
    %107 = vmatpush1.msra.mxu0 %v82
    %108 = vmatprep.subr.mxu0 0.0
    %109 = vmatpush1.msra.mxu0 %v83
    %110 = vmatprep.subr.mxu0 0.0
    %111 = vmatpush1.msra.mxu0 0.0
    %112 = vmatprep.subr.mxu0 0.0
    %113 = vmatpush1.msra.mxu0 0.0
    %114 = vmatprep.subr.mxu0 0.0
    %115 = vmatpush1.msra.mxu0 0.0
    %116 = vmatprep.subr.mxu0 0.0
    %117 = vmatpush1.msra.mxu0 0.0
    %118 = vmatprep.subr.mxu0 0.0
    %119 = vmatpush1.msra.mxu0 0.0
    %120 = vmatprep.subr.mxu0 0.0
    %121 = vmatpush1.msra.mxu0 0.0
    %122 = vmatprep.subr.mxu0 0.0
    %123 = vmatpush1.msra.mxu0 0.0
    %124 = vmatprep.subr.mxu0 0.0
    %125 = vmatpush1.msra.mxu0 0.0
    %126 = vmatprep.subr.mxu0 0.0
    %127 = vmatpush1.msra.mxu0 0.0
    %128 = vmatprep.subr.mxu0 0.0
    %129 = vmatpush1.msra.mxu0 0.0
    %130 = vmatprep.subr.mxu0 0.0
    %131 = vmatpush1.msra.mxu0 0.0
    %132 = vmatprep.subr.mxu0 0.0
    %133 = vmatpush1.msra.mxu0 0.0
    %134 = vmatprep.subr.mxu0 0.0
    %135 = vmatpush1.msra.mxu0 0.0
    %136 = vmatprep.subr.mxu0 0.0
    %137 = vmatpush1.msra.mxu0 0.0
    %138 = vmatprep.subr.mxu0 0.0
    %139 = vmatpush1.msra.mxu0 0.0
    %140 = vmatprep.subr.mxu0 0.0
    %141 = vmatpush1.msra.mxu0 0.0
    %142 = vmatprep.subr.mxu0 0.0
    %143 = vmatpush1.msra.mxu0 0.0
    %144 = vmatprep.subr.mxu0 0.0
    %145 = vmatpush1.msra.mxu0 0.0
    %146 = vmatprep.subr.mxu0 0.0
    %147 = vmatpush1.msra.mxu0 0.0
    %148 = vmatprep.subr.mxu0 0.0
    %149 = vmatpush1.msra.mxu0 0.0
    %150 = vmatprep.subr.mxu0 0.0
    %151 = vmatpush1.msra.mxu0 0.0
    %152 = vmatprep.subr.mxu0 0.0
    %153 = vmatpush1.msra.mxu0 0.0
    %154 = vmatprep.subr.mxu0 0.0
    %155 = vmatpush1.msra.mxu0 0.0
    %156 = vmatprep.subr.mxu0 0.0
    %157 = vmatpush1.msra.mxu0 0.0
    %158 = vmatprep.subr.mxu0 0.0
    %159 = vmatpush1.msra.mxu0 0.0
    %160 = vmatprep.subr.mxu0 0.0
    %161 = vmatpush1.msra.mxu0 0.0
    %162 = vmatprep.subr.mxu0 0.0
    %163 = vmatpush1.msra.mxu0 0.0
    %164 = vmatprep.subr.mxu0 0.0
    %165 = vmatpush1.msra.mxu0 0.0
    %166 = vmatprep.mubr.f32.mxu0 0.0
    %167 = vmatmul.mubr.f32.gmra.mrb[0].mxu0 %v91
    %v168 = vpop.f32.mrb[0].mxu0
    %v169 = vadd.f32 %v88, %v168
    %v170 = vpop.f32.mrb[0].mxu0
    %171 = vmatprep.mubr.f32.mxu0 0.0
    %172 = vmatmul.mubr.f32.gmra.mrb[0].mxu0 %v94
    %v173 = vpop.f32.mrb[0].mxu0
    %v174 = vadd.f32 %v88, %v173
    %v175 = vpop.f32.mrb[0].mxu0
    %176 = vmatprep.mubr.f32.mxu0 0.0
    %177 = vmatmul.mubr.f32.gmra.mrb[0].mxu0 %v97
    %v178 = vpop.f32.mrb[0].mxu0
    %v179 = vadd.f32 %v88, %v178
    %v180 = vpop.f32.mrb[0].mxu0
    %181 = vmatprep.mubr.f32.mxu0 0.0
    %182 = vmatmul.mubr.f32.gmra.mrb[0].mxu0 %v100
    %v183 = vpop.f32.mrb[0].mxu0
    %v184 = vadd.f32 %v88, %v183
    %v185 = vpop.f32.mrb[0].mxu0
    %186 = vdwg.mxu0
    %v187 = vld [vmem:[#allocation8] sm:$0xff]
    %v188 = vld [vmem:[#allocation8 + $0x8] sm:$0xff]
    %v189 = vld [vmem:[#allocation8 + $0x10] sm:$0xff]
    %v190 = vld [vmem:[#allocation8 + $0x18] sm:$0xff]
    %v191 = vld [vmem:[#allocation8 + $0x20] sm:$0xff]
    %v192 = vld [vmem:[#allocation8 + $0x28] sm:$0xff]
    %v193 = vld [vmem:[#allocation8 + $0x30] sm:$0xff]
    %v194 = vld [vmem:[#allocation8 + $0x38] sm:$0xff]
    %v195 = vmul.f32 %v169, %v187
    %v196 = vmul.f32 %v174, %v188
    %v197 = vmul.f32 %v179, %v189
    %v198 = vmul.f32 %v184, %v190
    %203 = vrot.lane.b32.xlu0 %v191, 64
    %v204 = vpop.permute.xlu0 %203
    %205 = vrot.lane.b32.xlu0 %v192, 64
    %v206 = vpop.permute.xlu0 %205
    %207 = vrot.lane.b32.xlu0 %v193, 64
    %v208 = vpop.permute.xlu0 %207
    %209 = vrot.lane.b32.xlu0 %v194, 64
    %v210 = vpop.permute.xlu0 %209
    %v215 = vmul.f32 %v169, %v204
    %v216 = vmul.f32 %v174, %v206
    %v217 = vmul.f32 %v179, %v208
    %v218 = vmul.f32 %v184, %v210
    %223 = vrot.lane.b32.xlu0 %v215, 64
    %v224 = vpop.permute.xlu0 %223
    %225 = vrot.lane.b32.xlu0 %v216, 64
    %v226 = vpop.permute.xlu0 %225
    %227 = vrot.lane.b32.xlu0 %v217, 64
    %v228 = vpop.permute.xlu0 %227
    %229 = vrot.lane.b32.xlu0 %v218, 64
    %v230 = vpop.permute.xlu0 %229
    %v235 = vadd.f32 %v195, %v224
    %v236 = vadd.f32 %v196, %v226
    %v237 = vadd.f32 %v197, %v228
    %v238 = vadd.f32 %v198, %v230
    %v239 = vld [vmem:[%s3] sm:$0xf]
    %v240 = vld [vmem:[%s3 + $0x4] sm:$0xf]
    %243 = vrot.lane.b32.xlu0 %v235, 96
    %v244 = vpop.permute.xlu0 %243
    %245 = vrot.lane.b32.xlu0 %v236, 96
    %v246 = vpop.permute.xlu0 %245
    %vm249 = vcmask 130048
    %v251 = vsel %vm249, %v239, 0
    %253 = vmatprep.subr.mxu0 0.0
    %254 = vmatpush1.msra.mxu0 %v244
    %255 = vmatprep.subr.mxu0 0.0
    %256 = vmatpush1.msra.mxu0 %v246
    %257 = vmatprep.subr.mxu0 0.0
    %258 = vmatpush1.msra.mxu0 0.0
    %259 = vmatprep.subr.mxu0 0.0
    %260 = vmatpush1.msra.mxu0 0.0
    %261 = vmatprep.subr.mxu0 0.0
    %262 = vmatpush1.msra.mxu0 0.0
    %263 = vmatprep.subr.mxu0 0.0
    %264 = vmatpush1.msra.mxu0 0.0
    %265 = vmatprep.subr.mxu0 0.0
    %266 = vmatpush1.msra.mxu0 0.0
    %267 = vmatprep.subr.mxu0 0.0
    %268 = vmatpush1.msra.mxu0 0.0
    %269 = vmatprep.subr.mxu0 0.0
    %270 = vmatpush1.msra.mxu0 0.0
    %271 = vmatprep.subr.mxu0 0.0
    %272 = vmatpush1.msra.mxu0 0.0
    %273 = vmatprep.subr.mxu0 0.0
    %274 = vmatpush1.msra.mxu0 0.0
    %275 = vmatprep.subr.mxu0 0.0
    %276 = vmatpush1.msra.mxu0 0.0
    %277 = vmatprep.subr.mxu0 0.0
    %278 = vmatpush1.msra.mxu0 0.0
    %279 = vmatprep.subr.mxu0 0.0
    %280 = vmatpush1.msra.mxu0 0.0
    %281 = vmatprep.subr.mxu0 0.0
    %282 = vmatpush1.msra.mxu0 0.0
    %283 = vmatprep.subr.mxu0 0.0
    %284 = vmatpush1.msra.mxu0 0.0
    %285 = vmatprep.subr.mxu0 0.0
    %286 = vmatpush1.msra.mxu0 0.0
    %287 = vmatprep.subr.mxu0 0.0
    %288 = vmatpush1.msra.mxu0 0.0
    %289 = vmatprep.subr.mxu0 0.0
    %290 = vmatpush1.msra.mxu0 0.0
    %291 = vmatprep.subr.mxu0 0.0
    %292 = vmatpush1.msra.mxu0 0.0
    %293 = vmatprep.subr.mxu0 0.0
    %294 = vmatpush1.msra.mxu0 0.0
    %295 = vmatprep.subr.mxu0 0.0
    %296 = vmatpush1.msra.mxu0 0.0
    %297 = vmatprep.subr.mxu0 0.0
    %298 = vmatpush1.msra.mxu0 0.0
    %299 = vmatprep.subr.mxu0 0.0
    %300 = vmatpush1.msra.mxu0 0.0
    %301 = vmatprep.subr.mxu0 0.0
    %302 = vmatpush1.msra.mxu0 0.0
    %303 = vmatprep.subr.mxu0 0.0
    %304 = vmatpush1.msra.mxu0 0.0
    %305 = vmatprep.subr.mxu0 0.0
    %306 = vmatpush1.msra.mxu0 0.0
    %307 = vmatprep.subr.mxu0 0.0
    %308 = vmatpush1.msra.mxu0 0.0
    %309 = vmatprep.subr.mxu0 0.0
    %310 = vmatpush1.msra.mxu0 0.0
    %311 = vmatprep.subr.mxu0 0.0
    %312 = vmatpush1.msra.mxu0 0.0
    %313 = vmatprep.subr.mxu0 0.0
    %314 = vmatpush1.msra.mxu0 0.0
    %315 = vmatprep.subr.mxu0 0.0
    %316 = vmatpush1.msra.mxu0 0.0
    %317 = vmatprep.mubr.f32.mxu0 0.0
    %318 = vmatmul.mubr.f32.gmra.mrb[0].mxu0 %v251
    %v319 = vpop.f32.mrb[0].mxu0
    %v320 = vadd.f32 0.0, %v319
    %v321 = vpop.f32.mrb[0].mxu0
    %322 = vdwg.mxu0
    %323 = vrot.lane.b32.xlu0 %v235, 80
    %v324 = vpop.permute.xlu0 %323
    %325 = vrot.lane.b32.xlu0 %v236, 80
    %v326 = vpop.permute.xlu0 %325
    %v330 = vsel %vm249, %v240, 0
    %332 = vmatprep.subr.mxu0 0.0
    %333 = vmatpush1.msra.mxu0 %v324
    %334 = vmatprep.subr.mxu0 0.0
    %335 = vmatpush1.msra.mxu0 %v326
    %336 = vmatprep.subr.mxu0 0.0
    %337 = vmatpush1.msra.mxu0 0.0
    %338 = vmatprep.subr.mxu0 0.0
    %339 = vmatpush1.msra.mxu0 0.0
    %340 = vmatprep.subr.mxu0 0.0
    %341 = vmatpush1.msra.mxu0 0.0
    %342 = vmatprep.subr.mxu0 0.0
    %343 = vmatpush1.msra.mxu0 0.0
    %344 = vmatprep.subr.mxu0 0.0
    %345 = vmatpush1.msra.mxu0 0.0
    %346 = vmatprep.subr.mxu0 0.0
    %347 = vmatpush1.msra.mxu0 0.0
    %348 = vmatprep.subr.mxu0 0.0
    %349 = vmatpush1.msra.mxu0 0.0
    %350 = vmatprep.subr.mxu0 0.0
    %351 = vmatpush1.msra.mxu0 0.0
    %352 = vmatprep.subr.mxu0 0.0
    %353 = vmatpush1.msra.mxu0 0.0
    %354 = vmatprep.subr.mxu0 0.0
    %355 = vmatpush1.msra.mxu0 0.0
    %356 = vmatprep.subr.mxu0 0.0
    %357 = vmatpush1.msra.mxu0 0.0
    %358 = vmatprep.subr.mxu0 0.0
    %359 = vmatpush1.msra.mxu0 0.0
    %360 = vmatprep.subr.mxu0 0.0
    %361 = vmatpush1.msra.mxu0 0.0
    %362 = vmatprep.subr.mxu0 0.0
    %363 = vmatpush1.msra.mxu0 0.0
    %364 = vmatprep.subr.mxu0 0.0
    %365 = vmatpush1.msra.mxu0 0.0
    %366 = vmatprep.subr.mxu0 0.0
    %367 = vmatpush1.msra.mxu0 0.0
    %368 = vmatprep.subr.mxu0 0.0
    %369 = vmatpush1.msra.mxu0 0.0
    %370 = vmatprep.subr.mxu0 0.0
    %371 = vmatpush1.msra.mxu0 0.0
    %372 = vmatprep.subr.mxu0 0.0
    %373 = vmatpush1.msra.mxu0 0.0
    %374 = vmatprep.subr.mxu0 0.0
    %375 = vmatpush1.msra.mxu0 0.0
    %376 = vmatprep.subr.mxu0 0.0
    %377 = vmatpush1.msra.mxu0 0.0
    %378 = vmatprep.subr.mxu0 0.0
    %379 = vmatpush1.msra.mxu0 0.0
    %380 = vmatprep.subr.mxu0 0.0
    %381 = vmatpush1.msra.mxu0 0.0
    %382 = vmatprep.subr.mxu0 0.0
    %383 = vmatpush1.msra.mxu0 0.0
    %384 = vmatprep.subr.mxu0 0.0
    %385 = vmatpush1.msra.mxu0 0.0
    %386 = vmatprep.subr.mxu0 0.0
    %387 = vmatpush1.msra.mxu0 0.0
    %388 = vmatprep.subr.mxu0 0.0
    %389 = vmatpush1.msra.mxu0 0.0
    %390 = vmatprep.subr.mxu0 0.0
    %391 = vmatpush1.msra.mxu0 0.0
    %392 = vmatprep.subr.mxu0 0.0
    %393 = vmatpush1.msra.mxu0 0.0
    %394 = vmatprep.subr.mxu0 0.0
    %395 = vmatpush1.msra.mxu0 0.0
    %396 = vmatprep.mubr.f32.mxu0 0.0
    %397 = vmatmul.mubr.f32.gmra.mrb[0].mxu0 %v330
    %v398 = vpop.f32.mrb[0].mxu0
    %v399 = vadd.f32 0.0, %v398
    %v400 = vpop.f32.mrb[0].mxu0
    %401 = vdwg.mxu0
    %402 = vrot.lane.b32.xlu0 %v235, 120
    %v403 = vpop.permute.xlu0 %402
    %404 = vrot.lane.b32.xlu0 %v236, 120
    %v405 = vpop.permute.xlu0 %404
    %vm406 = vcmask 64512
    %v407 = vsel %vm406, %v235, 0
    %v409 = vsel %vm406, %v236, 0
    %v411 = vsel %vm406, %v403, 0
    %v413 = vsel %vm406, %v405, 0
    %v416 = vsel %vm406, %v320, 0
    %418 = vmatprep.subr.mxu0 0.0
    %419 = vmatpush1.xpose.msra.mxu0 %v416
    %420 = vmatprep.subr.mxu0 0.0
    %421 = vmatpush1.xpose.msra.mxu0 0.0
    %422 = vmatprep.subr.mxu0 0.0
    %423 = vmatpush1.xpose.msra.mxu0 0.0
    %424 = vmatprep.subr.mxu0 0.0
    %425 = vmatpush1.xpose.msra.mxu0 0.0
    %426 = vmatprep.subr.mxu0 0.0
    %427 = vmatpush1.xpose.msra.mxu0 0.0
    %428 = vmatprep.subr.mxu0 0.0
    %429 = vmatpush1.xpose.msra.mxu0 0.0
    %430 = vmatprep.subr.mxu0 0.0
    %431 = vmatpush1.xpose.msra.mxu0 0.0
    %432 = vmatprep.subr.mxu0 0.0
    %433 = vmatpush1.xpose.msra.mxu0 0.0
    %434 = vmatprep.subr.mxu0 0.0
    %435 = vmatpush1.xpose.msra.mxu0 0.0
    %436 = vmatprep.subr.mxu0 0.0
    %437 = vmatpush1.xpose.msra.mxu0 0.0
    %438 = vmatprep.subr.mxu0 0.0
    %439 = vmatpush1.xpose.msra.mxu0 0.0
    %440 = vmatprep.subr.mxu0 0.0
    %441 = vmatpush1.xpose.msra.mxu0 0.0
    %442 = vmatprep.subr.mxu0 0.0
    %443 = vmatpush1.xpose.msra.mxu0 0.0
    %444 = vmatprep.subr.mxu0 0.0
    %445 = vmatpush1.xpose.msra.mxu0 0.0
    %446 = vmatprep.subr.mxu0 0.0
    %447 = vmatpush1.xpose.msra.mxu0 0.0
    %448 = vmatprep.subr.mxu0 0.0
    %449 = vmatpush1.xpose.msra.mxu0 0.0
    %450 = vmatprep.subr.mxu0 0.0
    %451 = vmatpush1.xpose.msra.mxu0 0.0
    %452 = vmatprep.subr.mxu0 0.0
    %453 = vmatpush1.xpose.msra.mxu0 0.0
    %454 = vmatprep.subr.mxu0 0.0
    %455 = vmatpush1.xpose.msra.mxu0 0.0
    %456 = vmatprep.subr.mxu0 0.0
    %457 = vmatpush1.xpose.msra.mxu0 0.0
    %458 = vmatprep.subr.mxu0 0.0
    %459 = vmatpush1.xpose.msra.mxu0 0.0
    %460 = vmatprep.subr.mxu0 0.0
    %461 = vmatpush1.xpose.msra.mxu0 0.0
    %462 = vmatprep.subr.mxu0 0.0
    %463 = vmatpush1.xpose.msra.mxu0 0.0
    %464 = vmatprep.subr.mxu0 0.0
    %465 = vmatpush1.xpose.msra.mxu0 0.0
    %466 = vmatprep.subr.mxu0 0.0
    %467 = vmatpush1.xpose.msra.mxu0 0.0
    %468 = vmatprep.subr.mxu0 0.0
    %469 = vmatpush1.xpose.msra.mxu0 0.0
    %470 = vmatprep.subr.mxu0 0.0
    %471 = vmatpush1.xpose.msra.mxu0 0.0
    %472 = vmatprep.subr.mxu0 0.0
    %473 = vmatpush1.xpose.msra.mxu0 0.0
    %474 = vmatprep.subr.mxu0 0.0
    %475 = vmatpush1.xpose.msra.mxu0 0.0
    %476 = vmatprep.subr.mxu0 0.0
    %477 = vmatpush1.xpose.msra.mxu0 0.0
    %478 = vmatprep.subr.mxu0 0.0
    %479 = vmatpush1.xpose.msra.mxu0 0.0
    %480 = vmatprep.subr.mxu0 0.0
    %481 = vmatpush1.xpose.msra.mxu0 0.0
    %482 = vmatprep.mubr.f32.mxu0 0.0
    %483 = vmatmul.mubr.f32.gmra.mrb[0].mxu0 %v407
    %v484 = vpop.f32.mrb[0].mxu0
    %v485 = vadd.f32 0.0, %v484
    %v486 = vpop.f32.mrb[0].mxu0
    %487 = vmatprep.mubr.f32.mxu0 0.0
    %488 = vmatmul.mubr.f32.gmra.mrb[0].mxu0 %v409
    %v489 = vpop.f32.mrb[0].mxu0
    %v490 = vadd.f32 0.0, %v489
    %v491 = vpop.f32.mrb[0].mxu0
    %492 = vmatprep.mubr.f32.mxu0 0.0
    %493 = vmatmul.mubr.f32.gmra.mrb[0].mxu0 %v411
    %v494 = vpop.f32.mrb[0].mxu0
    %v495 = vadd.f32 0.0, %v494
    %v496 = vpop.f32.mrb[0].mxu0
    %497 = vmatprep.mubr.f32.mxu0 0.0
    %498 = vmatmul.mubr.f32.gmra.mrb[0].mxu0 %v413
    %v499 = vpop.f32.mrb[0].mxu0
    %v500 = vadd.f32 0.0, %v499
    %v501 = vpop.f32.mrb[0].mxu0
    %502 = vdwg.mxu0
    %vm503 = vcmask 31744
    %v504 = vsel %vm503, %v485, -inf
    %505 = vmax.xlane.f32.xlu0 %v504
    %v506 = vpop.xlane.xlu0 %505
    %v507 = vsel %vm503, %v490, -inf
    %508 = vmax.xlane.f32.xlu0 %v507
    %v509 = vpop.xlane.xlu0 %508
    %v510 = vsel %vm503, %v495, -inf
    %511 = vmax.xlane.f32.xlu0 %v510
    %v512 = vpop.xlane.xlu0 %511
    %v513 = vsel %vm503, %v500, -inf
    %514 = vmax.xlane.f32.xlu0 %v513
    %v515 = vpop.xlane.xlu0 %514
    %v516 = vsub.f32 %v485, %v506
    %v517 = vsub.f32 %v490, %v509
    %v518 = vsub.f32 %v495, %v512
    %v519 = vsub.f32 %v500, %v515
    %v520 = vmul.f32 %v516, 1.442695
    %v521 = vpow.pop %v520
    %v522 = vmul.f32 %v517, 1.442695
    %v523 = vpow.pop %v522
    %v524 = vmul.f32 %v518, 1.442695
    %v525 = vpow.pop %v524
    %v526 = vmul.f32 %v519, 1.442695
    %v527 = vpow.pop %v526
    %v528 = vsel %vm503, %v521, 0.0
    %529 = vadd.xlane.f32.xlu0 %v528
    %v530 = vpop.xlane.xlu0 %529
    %v531 = vsel %vm503, %v523, 0.0
    %532 = vadd.xlane.f32.xlu0 %v531
    %v533 = vpop.xlane.xlu0 %532
    %v534 = vsel %vm503, %v525, 0.0
    %535 = vadd.xlane.f32.xlu0 %v534
    %v536 = vpop.xlane.xlu0 %535
    %v537 = vsel %vm503, %v527, 0.0
    %538 = vadd.xlane.f32.xlu0 %v537
    %v539 = vpop.xlane.xlu0 %538
    %v540 = vrcp.pop %v530
    %v541 = vrcp.pop %v533
    %v542 = vrcp.pop %v536
    %v543 = vrcp.pop %v539
    %v544 = vmul.f32 %v521, %v540
    %v545 = vmul.f32 %v523, %v541
    %v546 = vmul.f32 %v525, %v542
    %v547 = vmul.f32 %v527, %v543
    %v549 = vsel %vm503, %v544, 0
    %v552 = vsel %vm503, %v545, 0
    %v555 = vsel %vm503, %v546, 0
    %v558 = vsel %vm503, %v547, 0
    %vm560 = vcmask 1043456
    %v562 = vsel %vm560, %v399, 0
    %564 = vmatprep.subr.mxu0 0.0
    %565 = vmatpush1.msra.mxu0 %v562
    %566 = vmatprep.subr.mxu0 0.0
    %567 = vmatpush1.msra.mxu0 0.0
    %568 = vmatprep.subr.mxu0 0.0
    %569 = vmatpush1.msra.mxu0 0.0
    %570 = vmatprep.subr.mxu0 0.0
    %571 = vmatpush1.msra.mxu0 0.0
    %572 = vmatprep.subr.mxu0 0.0
    %573 = vmatpush1.msra.mxu0 0.0
    %574 = vmatprep.subr.mxu0 0.0
    %575 = vmatpush1.msra.mxu0 0.0
    %576 = vmatprep.subr.mxu0 0.0
    %577 = vmatpush1.msra.mxu0 0.0
    %578 = vmatprep.subr.mxu0 0.0
    %579 = vmatpush1.msra.mxu0 0.0
    %580 = vmatprep.subr.mxu0 0.0
    %581 = vmatpush1.msra.mxu0 0.0
    %582 = vmatprep.subr.mxu0 0.0
    %583 = vmatpush1.msra.mxu0 0.0
    %584 = vmatprep.subr.mxu0 0.0
    %585 = vmatpush1.msra.mxu0 0.0
    %586 = vmatprep.subr.mxu0 0.0
    %587 = vmatpush1.msra.mxu0 0.0
    %588 = vmatprep.subr.mxu0 0.0
    %589 = vmatpush1.msra.mxu0 0.0
    %590 = vmatprep.subr.mxu0 0.0
    %591 = vmatpush1.msra.mxu0 0.0
    %592 = vmatprep.subr.mxu0 0.0
    %593 = vmatpush1.msra.mxu0 0.0
    %594 = vmatprep.subr.mxu0 0.0
    %595 = vmatpush1.msra.mxu0 0.0
    %596 = vmatprep.subr.mxu0 0.0
    %597 = vmatpush1.msra.mxu0 0.0
    %598 = vmatprep.subr.mxu0 0.0
    %599 = vmatpush1.msra.mxu0 0.0
    %600 = vmatprep.subr.mxu0 0.0
    %601 = vmatpush1.msra.mxu0 0.0
    %602 = vmatprep.subr.mxu0 0.0
    %603 = vmatpush1.msra.mxu0 0.0
    %604 = vmatprep.subr.mxu0 0.0
    %605 = vmatpush1.msra.mxu0 0.0
    %606 = vmatprep.subr.mxu0 0.0
    %607 = vmatpush1.msra.mxu0 0.0
    %608 = vmatprep.subr.mxu0 0.0
    %609 = vmatpush1.msra.mxu0 0.0
    %610 = vmatprep.subr.mxu0 0.0
    %611 = vmatpush1.msra.mxu0 0.0
    %612 = vmatprep.subr.mxu0 0.0
    %613 = vmatpush1.msra.mxu0 0.0
    %614 = vmatprep.subr.mxu0 0.0
    %615 = vmatpush1.msra.mxu0 0.0
    %616 = vmatprep.subr.mxu0 0.0
    %617 = vmatpush1.msra.mxu0 0.0
    %618 = vmatprep.subr.mxu0 0.0
    %619 = vmatpush1.msra.mxu0 0.0
    %620 = vmatprep.subr.mxu0 0.0
    %621 = vmatpush1.msra.mxu0 0.0
    %622 = vmatprep.subr.mxu0 0.0
    %623 = vmatpush1.msra.mxu0 0.0
    %624 = vmatprep.subr.mxu0 0.0
    %625 = vmatpush1.msra.mxu0 0.0
    %626 = vmatprep.subr.mxu0 0.0
    %627 = vmatpush1.msra.mxu0 0.0
    %628 = vmatprep.mubr.f32.mxu0 0.0
    %629 = vmatmul.mubr.f32.gmra.mrb[0].mxu0 %v549
    %v630 = vpop.f32.mrb[0].mxu0
    %v631 = vadd.f32 0.0, %v630
    %v632 = vpop.f32.mrb[0].mxu0
    %633 = vmatprep.mubr.f32.mxu0 0.0
    %634 = vmatmul.mubr.f32.gmra.mrb[0].mxu0 %v552
    %v635 = vpop.f32.mrb[0].mxu0
    %v636 = vadd.f32 0.0, %v635
    %v637 = vpop.f32.mrb[0].mxu0
    %638 = vmatprep.mubr.f32.mxu0 0.0
    %639 = vmatmul.mubr.f32.gmra.mrb[0].mxu0 %v555
    %v640 = vpop.f32.mrb[0].mxu0
    %v641 = vadd.f32 0.0, %v640
    %v642 = vpop.f32.mrb[0].mxu0
    %643 = vmatprep.mubr.f32.mxu0 0.0
    %644 = vmatmul.mubr.f32.gmra.mrb[0].mxu0 %v558
    %v645 = vpop.f32.mrb[0].mxu0
    %v646 = vadd.f32 0.0, %v645
    %v647 = vpop.f32.mrb[0].mxu0
    %648 = vdwg.mxu0
    %649 = vst.msk [vmem:[#allocation2] sm:$0xff] %vm406, %v631
    %650 = vst.msk [vmem:[#allocation2 + $0x8] sm:$0xff] %vm406, %v636
    %653 = vrot.lane.b32.xlu0 %v641, 8
    %v654 = vpop.permute.xlu0 %653
    %655 = vrot.lane.b32.xlu0 %v646, 8
    %v656 = vpop.permute.xlu0 %655
    %vm659 = vcmask 130112
    %660 = vst.msk [vmem:[#allocation2] sm:$0xff] %vm659, %v654
    %661 = vst.msk [vmem:[#allocation2 + $0x8] sm:$0xff] %vm659, %v656
    %662 = vrot.lane.b32.xlu0 %v235, 112
    %v663 = vpop.permute.xlu0 %662
    %664 = vrot.lane.b32.xlu0 %v236, 112
    %v665 = vpop.permute.xlu0 %664
    %666 = vrot.lane.b32.xlu0 %v403, 112
    %v667 = vpop.permute.xlu0 %666
    %668 = vrot.lane.b32.xlu0 %v405, 112
    %v669 = vpop.permute.xlu0 %668
    %670 = vrot.lane.b32.xlu0 %v320, 120
    %v671 = vpop.permute.xlu0 %670
    %v672 = vsel %vm406, %v663, 0
    %v674 = vsel %vm406, %v665, 0
    %v676 = vsel %vm406, %v667, 0
    %v678 = vsel %vm406, %v669, 0
    %v680 = vsel %vm406, %v671, 0
    %682 = vmatprep.subr.mxu0 0.0
    %683 = vmatpush1.xpose.msra.mxu0 %v680
    %684 = vmatprep.subr.mxu0 0.0
    %685 = vmatpush1.xpose.msra.mxu0 0.0
    %686 = vmatprep.subr.mxu0 0.0
    %687 = vmatpush1.xpose.msra.mxu0 0.0
    %688 = vmatprep.subr.mxu0 0.0
    %689 = vmatpush1.xpose.msra.mxu0 0.0
    %690 = vmatprep.subr.mxu0 0.0
    %691 = vmatpush1.xpose.msra.mxu0 0.0
    %692 = vmatprep.subr.mxu0 0.0
    %693 = vmatpush1.xpose.msra.mxu0 0.0
    %694 = vmatprep.subr.mxu0 0.0
    %695 = vmatpush1.xpose.msra.mxu0 0.0
    %696 = vmatprep.subr.mxu0 0.0
    %697 = vmatpush1.xpose.msra.mxu0 0.0
    %698 = vmatprep.subr.mxu0 0.0
    %699 = vmatpush1.xpose.msra.mxu0 0.0
    %700 = vmatprep.subr.mxu0 0.0
    %701 = vmatpush1.xpose.msra.mxu0 0.0
    %702 = vmatprep.subr.mxu0 0.0
    %703 = vmatpush1.xpose.msra.mxu0 0.0
    %704 = vmatprep.subr.mxu0 0.0
    %705 = vmatpush1.xpose.msra.mxu0 0.0
    %706 = vmatprep.subr.mxu0 0.0
    %707 = vmatpush1.xpose.msra.mxu0 0.0
    %708 = vmatprep.subr.mxu0 0.0
    %709 = vmatpush1.xpose.msra.mxu0 0.0
    %710 = vmatprep.subr.mxu0 0.0
    %711 = vmatpush1.xpose.msra.mxu0 0.0
    %712 = vmatprep.subr.mxu0 0.0
    %713 = vmatpush1.xpose.msra.mxu0 0.0
    %714 = vmatprep.subr.mxu0 0.0
    %715 = vmatpush1.xpose.msra.mxu0 0.0
    %716 = vmatprep.subr.mxu0 0.0
    %717 = vmatpush1.xpose.msra.mxu0 0.0
    %718 = vmatprep.subr.mxu0 0.0
    %719 = vmatpush1.xpose.msra.mxu0 0.0
    %720 = vmatprep.subr.mxu0 0.0
    %721 = vmatpush1.xpose.msra.mxu0 0.0
    %722 = vmatprep.subr.mxu0 0.0
    %723 = vmatpush1.xpose.msra.mxu0 0.0
    %724 = vmatprep.subr.mxu0 0.0
    %725 = vmatpush1.xpose.msra.mxu0 0.0
    %726 = vmatprep.subr.mxu0 0.0
    %727 = vmatpush1.xpose.msra.mxu0 0.0
    %728 = vmatprep.subr.mxu0 0.0
    %729 = vmatpush1.xpose.msra.mxu0 0.0
    %730 = vmatprep.subr.mxu0 0.0
    %731 = vmatpush1.xpose.msra.mxu0 0.0
    %732 = vmatprep.subr.mxu0 0.0
    %733 = vmatpush1.xpose.msra.mxu0 0.0
    %734 = vmatprep.subr.mxu0 0.0
    %735 = vmatpush1.xpose.msra.mxu0 0.0
    %736 = vmatprep.subr.mxu0 0.0
    %737 = vmatpush1.xpose.msra.mxu0 0.0
    %738 = vmatprep.subr.mxu0 0.0
    %739 = vmatpush1.xpose.msra.mxu0 0.0
    %740 = vmatprep.subr.mxu0 0.0
    %741 = vmatpush1.xpose.msra.mxu0 0.0
    %742 = vmatprep.subr.mxu0 0.0
    %743 = vmatpush1.xpose.msra.mxu0 0.0
    %744 = vmatprep.subr.mxu0 0.0
    %745 = vmatpush1.xpose.msra.mxu0 0.0
    %746 = vmatprep.mubr.f32.mxu0 0.0
    %747 = vmatmul.mubr.f32.gmra.mrb[0].mxu0 %v672
    %v748 = vpop.f32.mrb[0].mxu0
    %v749 = vadd.f32 0.0, %v748
    %v750 = vpop.f32.mrb[0].mxu0
    %751 = vmatprep.mubr.f32.mxu0 0.0
    %752 = vmatmul.mubr.f32.gmra.mrb[0].mxu0 %v674
    %v753 = vpop.f32.mrb[0].mxu0
    %v754 = vadd.f32 0.0, %v753
    %v755 = vpop.f32.mrb[0].mxu0
    %756 = vmatprep.mubr.f32.mxu0 0.0
    %757 = vmatmul.mubr.f32.gmra.mrb[0].mxu0 %v676
    %v758 = vpop.f32.mrb[0].mxu0
    %v759 = vadd.f32 0.0, %v758
    %v760 = vpop.f32.mrb[0].mxu0
    %761 = vmatprep.mubr.f32.mxu0 0.0
    %762 = vmatmul.mubr.f32.gmra.mrb[0].mxu0 %v678
    %v763 = vpop.f32.mrb[0].mxu0
    %v764 = vadd.f32 0.0, %v763
    %v765 = vpop.f32.mrb[0].mxu0
    %766 = vdwg.mxu0
    %v767 = vsel %vm503, %v749, -inf
    %768 = vmax.xlane.f32.xlu0 %v767
    %v769 = vpop.xlane.xlu0 %768
    %v770 = vsel %vm503, %v754, -inf
    %771 = vmax.xlane.f32.xlu0 %v770
    %v772 = vpop.xlane.xlu0 %771
    %v773 = vsel %vm503, %v759, -inf
    %774 = vmax.xlane.f32.xlu0 %v773
    %v775 = vpop.xlane.xlu0 %774
    %v776 = vsel %vm503, %v764, -inf
    %777 = vmax.xlane.f32.xlu0 %v776
    %v778 = vpop.xlane.xlu0 %777
    %v779 = vsub.f32 %v749, %v769
    %v780 = vsub.f32 %v754, %v772
    %v781 = vsub.f32 %v759, %v775
    %v782 = vsub.f32 %v764, %v778
    %v783 = vmul.f32 %v779, 1.442695
    %v784 = vpow.pop %v783
    %v785 = vmul.f32 %v780, 1.442695
    %v786 = vpow.pop %v785
    %v787 = vmul.f32 %v781, 1.442695
    %v788 = vpow.pop %v787
    %v789 = vmul.f32 %v782, 1.442695
    %v790 = vpow.pop %v789
    %v791 = vsel %vm503, %v784, 0.0
    %792 = vadd.xlane.f32.xlu0 %v791
    %v793 = vpop.xlane.xlu0 %792
    %v794 = vsel %vm503, %v786, 0.0
    %795 = vadd.xlane.f32.xlu0 %v794
    %v796 = vpop.xlane.xlu0 %795
    %v797 = vsel %vm503, %v788, 0.0
    %798 = vadd.xlane.f32.xlu0 %v797
    %v799 = vpop.xlane.xlu0 %798
    %v800 = vsel %vm503, %v790, 0.0
    %801 = vadd.xlane.f32.xlu0 %v800
    %v802 = vpop.xlane.xlu0 %801
    %v803 = vrcp.pop %v793
    %v804 = vrcp.pop %v796
    %v805 = vrcp.pop %v799
    %v806 = vrcp.pop %v802
    %v807 = vmul.f32 %v784, %v803
    %v808 = vmul.f32 %v786, %v804
    %v809 = vmul.f32 %v788, %v805
    %v810 = vmul.f32 %v790, %v806
    %811 = vrot.lane.b32.xlu0 %v399, 120
    %v812 = vpop.permute.xlu0 %811
    %v814 = vsel %vm503, %v807, 0
    %v817 = vsel %vm503, %v808, 0
    %v820 = vsel %vm503, %v809, 0
    %v823 = vsel %vm503, %v810, 0
    %v825 = vsel %vm560, %v812, 0
    %827 = vmatprep.subr.mxu0 0.0
    %828 = vmatpush1.msra.mxu0 %v825
    %829 = vmatprep.subr.mxu0 0.0
    %830 = vmatpush1.msra.mxu0 0.0
    %831 = vmatprep.subr.mxu0 0.0
    %832 = vmatpush1.msra.mxu0 0.0
    %833 = vmatprep.subr.mxu0 0.0
    %834 = vmatpush1.msra.mxu0 0.0
    %835 = vmatprep.subr.mxu0 0.0
    %836 = vmatpush1.msra.mxu0 0.0
    %837 = vmatprep.subr.mxu0 0.0
    %838 = vmatpush1.msra.mxu0 0.0
    %839 = vmatprep.subr.mxu0 0.0
    %840 = vmatpush1.msra.mxu0 0.0
    %841 = vmatprep.subr.mxu0 0.0
    %842 = vmatpush1.msra.mxu0 0.0
    %843 = vmatprep.subr.mxu0 0.0
    %844 = vmatpush1.msra.mxu0 0.0
    %845 = vmatprep.subr.mxu0 0.0
    %846 = vmatpush1.msra.mxu0 0.0
    %847 = vmatprep.subr.mxu0 0.0
    %848 = vmatpush1.msra.mxu0 0.0
    %849 = vmatprep.subr.mxu0 0.0
    %850 = vmatpush1.msra.mxu0 0.0
    %851 = vmatprep.subr.mxu0 0.0
    %852 = vmatpush1.msra.mxu0 0.0
    %853 = vmatprep.subr.mxu0 0.0
    %854 = vmatpush1.msra.mxu0 0.0
    %855 = vmatprep.subr.mxu0 0.0
    %856 = vmatpush1.msra.mxu0 0.0
    %857 = vmatprep.subr.mxu0 0.0
    %858 = vmatpush1.msra.mxu0 0.0
    %859 = vmatprep.subr.mxu0 0.0
    %860 = vmatpush1.msra.mxu0 0.0
    %861 = vmatprep.subr.mxu0 0.0
    %862 = vmatpush1.msra.mxu0 0.0
    %863 = vmatprep.subr.mxu0 0.0
    %864 = vmatpush1.msra.mxu0 0.0
    %865 = vmatprep.subr.mxu0 0.0
    %866 = vmatpush1.msra.mxu0 0.0
    %867 = vmatprep.subr.mxu0 0.0
    %868 = vmatpush1.msra.mxu0 0.0
    %869 = vmatprep.subr.mxu0 0.0
    %870 = vmatpush1.msra.mxu0 0.0
    %871 = vmatprep.subr.mxu0 0.0
    %872 = vmatpush1.msra.mxu0 0.0
    %873 = vmatprep.subr.mxu0 0.0
    %874 = vmatpush1.msra.mxu0 0.0
    %875 = vmatprep.subr.mxu0 0.0
    %876 = vmatpush1.msra.mxu0 0.0
    %877 = vmatprep.subr.mxu0 0.0
    %878 = vmatpush1.msra.mxu0 0.0
    %879 = vmatprep.subr.mxu0 0.0
    %880 = vmatpush1.msra.mxu0 0.0
    %881 = vmatprep.subr.mxu0 0.0
    %882 = vmatpush1.msra.mxu0 0.0
    %883 = vmatprep.subr.mxu0 0.0
    %884 = vmatpush1.msra.mxu0 0.0
    %885 = vmatprep.subr.mxu0 0.0
    %886 = vmatpush1.msra.mxu0 0.0
    %887 = vmatprep.subr.mxu0 0.0
    %888 = vmatpush1.msra.mxu0 0.0
    %889 = vmatprep.subr.mxu0 0.0
    %890 = vmatpush1.msra.mxu0 0.0
    %891 = vmatprep.mubr.f32.mxu0 0.0
    %892 = vmatmul.mubr.f32.gmra.mrb[0].mxu0 %v814
    %v893 = vpop.f32.mrb[0].mxu0
    %v894 = vadd.f32 0.0, %v893
    %v895 = vpop.f32.mrb[0].mxu0
    %896 = vmatprep.mubr.f32.mxu0 0.0
    %897 = vmatmul.mubr.f32.gmra.mrb[0].mxu0 %v817
    %v898 = vpop.f32.mrb[0].mxu0
    %v899 = vadd.f32 0.0, %v898
    %v900 = vpop.f32.mrb[0].mxu0
    %901 = vmatprep.mubr.f32.mxu0 0.0
    %902 = vmatmul.mubr.f32.gmra.mrb[0].mxu0 %v820
    %v903 = vpop.f32.mrb[0].mxu0
    %v904 = vadd.f32 0.0, %v903
    %v905 = vpop.f32.mrb[0].mxu0
    %906 = vmatprep.mubr.f32.mxu0 0.0
    %907 = vmatmul.mubr.f32.gmra.mrb[0].mxu0 %v823
    %v908 = vpop.f32.mrb[0].mxu0
    %v909 = vadd.f32 0.0, %v908
    %v910 = vpop.f32.mrb[0].mxu0
    %911 = vdwg.mxu0
    %914 = vrot.lane.b32.xlu0 %v894, 16
    %v915 = vpop.permute.xlu0 %914
    %916 = vrot.lane.b32.xlu0 %v899, 16
    %v917 = vpop.permute.xlu0 %916
    %vm920 = vcmask 195712
    %921 = vst.msk [vmem:[#allocation2] sm:$0xff] %vm920, %v915
    %922 = vst.msk [vmem:[#allocation2 + $0x8] sm:$0xff] %vm920, %v917
    %925 = vrot.lane.b32.xlu0 %v904, 24
    %v926 = vpop.permute.xlu0 %925
    %927 = vrot.lane.b32.xlu0 %v909, 24
    %v928 = vpop.permute.xlu0 %927
    %vm931 = vcmask 261312
    %932 = vst.msk [vmem:[#allocation2] sm:$0xff] %vm931, %v926
    %933 = vst.msk [vmem:[#allocation2 + $0x8] sm:$0xff] %vm931, %v928
    %936 = vrot.lane.b32.xlu0 %v237, 96
    %v937 = vpop.permute.xlu0 %936
    %938 = vrot.lane.b32.xlu0 %v238, 96
    %v939 = vpop.permute.xlu0 %938
    %942 = vmatprep.subr.mxu0 0.0
    %943 = vmatpush1.msra.mxu0 %v937
    %944 = vmatprep.subr.mxu0 0.0
    %945 = vmatpush1.msra.mxu0 %v939
    %946 = vmatprep.subr.mxu0 0.0
    %947 = vmatpush1.msra.mxu0 0.0
    %948 = vmatprep.subr.mxu0 0.0
    %949 = vmatpush1.msra.mxu0 0.0
    %950 = vmatprep.subr.mxu0 0.0
    %951 = vmatpush1.msra.mxu0 0.0
    %952 = vmatprep.subr.mxu0 0.0
    %953 = vmatpush1.msra.mxu0 0.0
    %954 = vmatprep.subr.mxu0 0.0
    %955 = vmatpush1.msra.mxu0 0.0
    %956 = vmatprep.subr.mxu0 0.0
    %957 = vmatpush1.msra.mxu0 0.0
    %958 = vmatprep.subr.mxu0 0.0
    %959 = vmatpush1.msra.mxu0 0.0
    %960 = vmatprep.subr.mxu0 0.0
    %961 = vmatpush1.msra.mxu0 0.0
    %962 = vmatprep.subr.mxu0 0.0
    %963 = vmatpush1.msra.mxu0 0.0
    %964 = vmatprep.subr.mxu0 0.0
    %965 = vmatpush1.msra.mxu0 0.0
    %966 = vmatprep.subr.mxu0 0.0
    %967 = vmatpush1.msra.mxu0 0.0
    %968 = vmatprep.subr.mxu0 0.0
    %969 = vmatpush1.msra.mxu0 0.0
    %970 = vmatprep.subr.mxu0 0.0
    %971 = vmatpush1.msra.mxu0 0.0
    %972 = vmatprep.subr.mxu0 0.0
    %973 = vmatpush1.msra.mxu0 0.0
    %974 = vmatprep.subr.mxu0 0.0
    %975 = vmatpush1.msra.mxu0 0.0
    %976 = vmatprep.subr.mxu0 0.0
    %977 = vmatpush1.msra.mxu0 0.0
    %978 = vmatprep.subr.mxu0 0.0
    %979 = vmatpush1.msra.mxu0 0.0
    %980 = vmatprep.subr.mxu0 0.0
    %981 = vmatpush1.msra.mxu0 0.0
    %982 = vmatprep.subr.mxu0 0.0
    %983 = vmatpush1.msra.mxu0 0.0
    %984 = vmatprep.subr.mxu0 0.0
    %985 = vmatpush1.msra.mxu0 0.0
    %986 = vmatprep.subr.mxu0 0.0
    %987 = vmatpush1.msra.mxu0 0.0
    %988 = vmatprep.subr.mxu0 0.0
    %989 = vmatpush1.msra.mxu0 0.0
    %990 = vmatprep.subr.mxu0 0.0
    %991 = vmatpush1.msra.mxu0 0.0
    %992 = vmatprep.subr.mxu0 0.0
    %993 = vmatpush1.msra.mxu0 0.0
    %994 = vmatprep.subr.mxu0 0.0
    %995 = vmatpush1.msra.mxu0 0.0
    %996 = vmatprep.subr.mxu0 0.0
    %997 = vmatpush1.msra.mxu0 0.0
    %998 = vmatprep.subr.mxu0 0.0
    %999 = vmatpush1.msra.mxu0 0.0
    %1000 = vmatprep.subr.mxu0 0.0
    %1001 = vmatpush1.msra.mxu0 0.0
    %1002 = vmatprep.subr.mxu0 0.0
    %1003 = vmatpush1.msra.mxu0 0.0
    %1004 = vmatprep.subr.mxu0 0.0
    %1005 = vmatpush1.msra.mxu0 0.0
    %1006 = vmatprep.mubr.f32.mxu0 0.0
    %1007 = vmatmul.mubr.f32.gmra.mrb[0].mxu0 %v251
    %v1008 = vpop.f32.mrb[0].mxu0
    %v1009 = vadd.f32 0.0, %v1008
    %v1010 = vpop.f32.mrb[0].mxu0
    %1011 = vdwg.mxu0
    %1012 = vrot.lane.b32.xlu0 %v237, 80
    %v1013 = vpop.permute.xlu0 %1012
    %1014 = vrot.lane.b32.xlu0 %v238, 80
    %v1015 = vpop.permute.xlu0 %1014
    %1018 = vmatprep.subr.mxu0 0.0
    %1019 = vmatpush1.msra.mxu0 %v1013
    %1020 = vmatprep.subr.mxu0 0.0
    %1021 = vmatpush1.msra.mxu0 %v1015
    %1022 = vmatprep.subr.mxu0 0.0
    %1023 = vmatpush1.msra.mxu0 0.0
    %1024 = vmatprep.subr.mxu0 0.0
    %1025 = vmatpush1.msra.mxu0 0.0
    %1026 = vmatprep.subr.mxu0 0.0
    %1027 = vmatpush1.msra.mxu0 0.0
    %1028 = vmatprep.subr.mxu0 0.0
    %1029 = vmatpush1.msra.mxu0 0.0
    %1030 = vmatprep.subr.mxu0 0.0
    %1031 = vmatpush1.msra.mxu0 0.0
    %1032 = vmatprep.subr.mxu0 0.0
    %1033 = vmatpush1.msra.mxu0 0.0
    %1034 = vmatprep.subr.mxu0 0.0
    %1035 = vmatpush1.msra.mxu0 0.0
    %1036 = vmatprep.subr.mxu0 0.0
    %1037 = vmatpush1.msra.mxu0 0.0
    %1038 = vmatprep.subr.mxu0 0.0
    %1039 = vmatpush1.msra.mxu0 0.0
    %1040 = vmatprep.subr.mxu0 0.0
    %1041 = vmatpush1.msra.mxu0 0.0
    %1042 = vmatprep.subr.mxu0 0.0
    %1043 = vmatpush1.msra.mxu0 0.0
    %1044 = vmatprep.subr.mxu0 0.0
    %1045 = vmatpush1.msra.mxu0 0.0
    %1046 = vmatprep.subr.mxu0 0.0
    %1047 = vmatpush1.msra.mxu0 0.0
    %1048 = vmatprep.subr.mxu0 0.0
    %1049 = vmatpush1.msra.mxu0 0.0
    %1050 = vmatprep.subr.mxu0 0.0
    %1051 = vmatpush1.msra.mxu0 0.0
    %1052 = vmatprep.subr.mxu0 0.0
    %1053 = vmatpush1.msra.mxu0 0.0
    %1054 = vmatprep.subr.mxu0 0.0
    %1055 = vmatpush1.msra.mxu0 0.0
    %1056 = vmatprep.subr.mxu0 0.0
    %1057 = vmatpush1.msra.mxu0 0.0
    %1058 = vmatprep.subr.mxu0 0.0
    %1059 = vmatpush1.msra.mxu0 0.0
    %1060 = vmatprep.subr.mxu0 0.0
    %1061 = vmatpush1.msra.mxu0 0.0
    %1062 = vmatprep.subr.mxu0 0.0
    %1063 = vmatpush1.msra.mxu0 0.0
    %1064 = vmatprep.subr.mxu0 0.0
    %1065 = vmatpush1.msra.mxu0 0.0
    %1066 = vmatprep.subr.mxu0 0.0
    %1067 = vmatpush1.msra.mxu0 0.0
    %1068 = vmatprep.subr.mxu0 0.0
    %1069 = vmatpush1.msra.mxu0 0.0
    %1070 = vmatprep.subr.mxu0 0.0
    %1071 = vmatpush1.msra.mxu0 0.0
    %1072 = vmatprep.subr.mxu0 0.0
    %1073 = vmatpush1.msra.mxu0 0.0
    %1074 = vmatprep.subr.mxu0 0.0
    %1075 = vmatpush1.msra.mxu0 0.0
    %1076 = vmatprep.subr.mxu0 0.0
    %1077 = vmatpush1.msra.mxu0 0.0
    %1078 = vmatprep.subr.mxu0 0.0
    %1079 = vmatpush1.msra.mxu0 0.0
    %1080 = vmatprep.subr.mxu0 0.0
    %1081 = vmatpush1.msra.mxu0 0.0
    %1082 = vmatprep.mubr.f32.mxu0 0.0
    %1083 = vmatmul.mubr.f32.gmra.mrb[0].mxu0 %v330
    %v1084 = vpop.f32.mrb[0].mxu0
    %v1085 = vadd.f32 0.0, %v1084
    %v1086 = vpop.f32.mrb[0].mxu0
    %1087 = vdwg.mxu0
    %1088 = vrot.lane.b32.xlu0 %v237, 120
    %v1089 = vpop.permute.xlu0 %1088
    %1090 = vrot.lane.b32.xlu0 %v238, 120
    %v1091 = vpop.permute.xlu0 %1090
    %v1092 = vsel %vm406, %v237, 0
    %v1094 = vsel %vm406, %v238, 0
    %v1096 = vsel %vm406, %v1089, 0
    %v1098 = vsel %vm406, %v1091, 0
    %v1101 = vsel %vm406, %v1009, 0
    %1103 = vmatprep.subr.mxu0 0.0
    %1104 = vmatpush1.xpose.msra.mxu0 %v1101
    %1105 = vmatprep.subr.mxu0 0.0
    %1106 = vmatpush1.xpose.msra.mxu0 0.0
    %1107 = vmatprep.subr.mxu0 0.0
    %1108 = vmatpush1.xpose.msra.mxu0 0.0
    %1109 = vmatprep.subr.mxu0 0.0
    %1110 = vmatpush1.xpose.msra.mxu0 0.0
    %1111 = vmatprep.subr.mxu0 0.0
    %1112 = vmatpush1.xpose.msra.mxu0 0.0
    %1113 = vmatprep.subr.mxu0 0.0
    %1114 = vmatpush1.xpose.msra.mxu0 0.0
    %1115 = vmatprep.subr.mxu0 0.0
    %1116 = vmatpush1.xpose.msra.mxu0 0.0
    %1117 = vmatprep.subr.mxu0 0.0
    %1118 = vmatpush1.xpose.msra.mxu0 0.0
    %1119 = vmatprep.subr.mxu0 0.0
    %1120 = vmatpush1.xpose.msra.mxu0 0.0
    %1121 = vmatprep.subr.mxu0 0.0
    %1122 = vmatpush1.xpose.msra.mxu0 0.0
    %1123 = vmatprep.subr.mxu0 0.0
    %1124 = vmatpush1.xpose.msra.mxu0 0.0
    %1125 = vmatprep.subr.mxu0 0.0
    %1126 = vmatpush1.xpose.msra.mxu0 0.0
    %1127 = vmatprep.subr.mxu0 0.0
    %1128 = vmatpush1.xpose.msra.mxu0 0.0
    %1129 = vmatprep.subr.mxu0 0.0
    %1130 = vmatpush1.xpose.msra.mxu0 0.0
    %1131 = vmatprep.subr.mxu0 0.0
    %1132 = vmatpush1.xpose.msra.mxu0 0.0
    %1133 = vmatprep.subr.mxu0 0.0
    %1134 = vmatpush1.xpose.msra.mxu0 0.0
    %1135 = vmatprep.subr.mxu0 0.0
    %1136 = vmatpush1.xpose.msra.mxu0 0.0
    %1137 = vmatprep.subr.mxu0 0.0
    %1138 = vmatpush1.xpose.msra.mxu0 0.0
    %1139 = vmatprep.subr.mxu0 0.0
    %1140 = vmatpush1.xpose.msra.mxu0 0.0
    %1141 = vmatprep.subr.mxu0 0.0
    %1142 = vmatpush1.xpose.msra.mxu0 0.0
    %1143 = vmatprep.subr.mxu0 0.0
    %1144 = vmatpush1.xpose.msra.mxu0 0.0
    %1145 = vmatprep.subr.mxu0 0.0
    %1146 = vmatpush1.xpose.msra.mxu0 0.0
    %1147 = vmatprep.subr.mxu0 0.0
    %1148 = vmatpush1.xpose.msra.mxu0 0.0
    %1149 = vmatprep.subr.mxu0 0.0
    %1150 = vmatpush1.xpose.msra.mxu0 0.0
    %1151 = vmatprep.subr.mxu0 0.0
    %1152 = vmatpush1.xpose.msra.mxu0 0.0
    %1153 = vmatprep.subr.mxu0 0.0
    %1154 = vmatpush1.xpose.msra.mxu0 0.0
    %1155 = vmatprep.subr.mxu0 0.0
    %1156 = vmatpush1.xpose.msra.mxu0 0.0
    %1157 = vmatprep.subr.mxu0 0.0
    %1158 = vmatpush1.xpose.msra.mxu0 0.0
    %1159 = vmatprep.subr.mxu0 0.0
    %1160 = vmatpush1.xpose.msra.mxu0 0.0
    %1161 = vmatprep.subr.mxu0 0.0
    %1162 = vmatpush1.xpose.msra.mxu0 0.0
    %1163 = vmatprep.subr.mxu0 0.0
    %1164 = vmatpush1.xpose.msra.mxu0 0.0
    %1165 = vmatprep.subr.mxu0 0.0
    %1166 = vmatpush1.xpose.msra.mxu0 0.0
    %1167 = vmatprep.mubr.f32.mxu0 0.0
    %1168 = vmatmul.mubr.f32.gmra.mrb[0].mxu0 %v1092
    %v1169 = vpop.f32.mrb[0].mxu0
    %v1170 = vadd.f32 0.0, %v1169
    %v1171 = vpop.f32.mrb[0].mxu0
    %1172 = vmatprep.mubr.f32.mxu0 0.0
    %1173 = vmatmul.mubr.f32.gmra.mrb[0].mxu0 %v1094
    %v1174 = vpop.f32.mrb[0].mxu0
    %v1175 = vadd.f32 0.0, %v1174
    %v1176 = vpop.f32.mrb[0].mxu0
    %1177 = vmatprep.mubr.f32.mxu0 0.0
    %1178 = vmatmul.mubr.f32.gmra.mrb[0].mxu0 %v1096
    %v1179 = vpop.f32.mrb[0].mxu0
    %v1180 = vadd.f32 0.0, %v1179
    %v1181 = vpop.f32.mrb[0].mxu0
    %1182 = vmatprep.mubr.f32.mxu0 0.0
    %1183 = vmatmul.mubr.f32.gmra.mrb[0].mxu0 %v1098
    %v1184 = vpop.f32.mrb[0].mxu0
    %v1185 = vadd.f32 0.0, %v1184
    %v1186 = vpop.f32.mrb[0].mxu0
    %1187 = vdwg.mxu0
    %v1188 = vsel %vm503, %v1170, -inf
    %1189 = vmax.xlane.f32.xlu0 %v1188
    %v1190 = vpop.xlane.xlu0 %1189
    %v1191 = vsel %vm503, %v1175, -inf
    %1192 = vmax.xlane.f32.xlu0 %v1191
    %v1193 = vpop.xlane.xlu0 %1192
    %v1194 = vsel %vm503, %v1180, -inf
    %1195 = vmax.xlane.f32.xlu0 %v1194
    %v1196 = vpop.xlane.xlu0 %1195
    %v1197 = vsel %vm503, %v1185, -inf
    %1198 = vmax.xlane.f32.xlu0 %v1197
    %v1199 = vpop.xlane.xlu0 %1198
    %v1200 = vsub.f32 %v1170, %v1190
    %v1201 = vsub.f32 %v1175, %v1193
    %v1202 = vsub.f32 %v1180, %v1196
    %v1203 = vsub.f32 %v1185, %v1199
    %v1204 = vmul.f32 %v1200, 1.442695
    %v1205 = vpow.pop %v1204
    %v1206 = vmul.f32 %v1201, 1.442695
    %v1207 = vpow.pop %v1206
    %v1208 = vmul.f32 %v1202, 1.442695
    %v1209 = vpow.pop %v1208
    %v1210 = vmul.f32 %v1203, 1.442695
    %v1211 = vpow.pop %v1210
    %v1212 = vsel %vm503, %v1205, 0.0
    %1213 = vadd.xlane.f32.xlu0 %v1212
    %v1214 = vpop.xlane.xlu0 %1213
    %v1215 = vsel %vm503, %v1207, 0.0
    %1216 = vadd.xlane.f32.xlu0 %v1215
    %v1217 = vpop.xlane.xlu0 %1216
    %v1218 = vsel %vm503, %v1209, 0.0
    %1219 = vadd.xlane.f32.xlu0 %v1218
    %v1220 = vpop.xlane.xlu0 %1219
    %v1221 = vsel %vm503, %v1211, 0.0
    %1222 = vadd.xlane.f32.xlu0 %v1221
    %v1223 = vpop.xlane.xlu0 %1222
    %v1224 = vrcp.pop %v1214
    %v1225 = vrcp.pop %v1217
    %v1226 = vrcp.pop %v1220
    %v1227 = vrcp.pop %v1223
    %v1228 = vmul.f32 %v1205, %v1224
    %v1229 = vmul.f32 %v1207, %v1225
    %v1230 = vmul.f32 %v1209, %v1226
    %v1231 = vmul.f32 %v1211, %v1227
    %v1233 = vsel %vm503, %v1228, 0
    %v1236 = vsel %vm503, %v1229, 0
    %v1239 = vsel %vm503, %v1230, 0
    %v1242 = vsel %vm503, %v1231, 0
    %v1245 = vsel %vm560, %v1085, 0
    %1247 = vmatprep.subr.mxu0 0.0
    %1248 = vmatpush1.msra.mxu0 %v1245
    %1249 = vmatprep.subr.mxu0 0.0
    %1250 = vmatpush1.msra.mxu0 0.0
    %1251 = vmatprep.subr.mxu0 0.0
    %1252 = vmatpush1.msra.mxu0 0.0
    %1253 = vmatprep.subr.mxu0 0.0
    %1254 = vmatpush1.msra.mxu0 0.0
    %1255 = vmatprep.subr.mxu0 0.0
    %1256 = vmatpush1.msra.mxu0 0.0
    %1257 = vmatprep.subr.mxu0 0.0
    %1258 = vmatpush1.msra.mxu0 0.0
    %1259 = vmatprep.subr.mxu0 0.0
    %1260 = vmatpush1.msra.mxu0 0.0
    %1261 = vmatprep.subr.mxu0 0.0
    %1262 = vmatpush1.msra.mxu0 0.0
    %1263 = vmatprep.subr.mxu0 0.0
    %1264 = vmatpush1.msra.mxu0 0.0
    %1265 = vmatprep.subr.mxu0 0.0
    %1266 = vmatpush1.msra.mxu0 0.0
    %1267 = vmatprep.subr.mxu0 0.0
    %1268 = vmatpush1.msra.mxu0 0.0
    %1269 = vmatprep.subr.mxu0 0.0
    %1270 = vmatpush1.msra.mxu0 0.0
    %1271 = vmatprep.subr.mxu0 0.0
    %1272 = vmatpush1.msra.mxu0 0.0
    %1273 = vmatprep.subr.mxu0 0.0
    %1274 = vmatpush1.msra.mxu0 0.0
    %1275 = vmatprep.subr.mxu0 0.0
    %1276 = vmatpush1.msra.mxu0 0.0
    %1277 = vmatprep.subr.mxu0 0.0
    %1278 = vmatpush1.msra.mxu0 0.0
    %1279 = vmatprep.subr.mxu0 0.0
    %1280 = vmatpush1.msra.mxu0 0.0
    %1281 = vmatprep.subr.mxu0 0.0
    %1282 = vmatpush1.msra.mxu0 0.0
    %1283 = vmatprep.subr.mxu0 0.0
    %1284 = vmatpush1.msra.mxu0 0.0
    %1285 = vmatprep.subr.mxu0 0.0
    %1286 = vmatpush1.msra.mxu0 0.0
    %1287 = vmatprep.subr.mxu0 0.0
    %1288 = vmatpush1.msra.mxu0 0.0
    %1289 = vmatprep.subr.mxu0 0.0
    %1290 = vmatpush1.msra.mxu0 0.0
    %1291 = vmatprep.subr.mxu0 0.0
    %1292 = vmatpush1.msra.mxu0 0.0
    %1293 = vmatprep.subr.mxu0 0.0
    %1294 = vmatpush1.msra.mxu0 0.0
    %1295 = vmatprep.subr.mxu0 0.0
    %1296 = vmatpush1.msra.mxu0 0.0
    %1297 = vmatprep.subr.mxu0 0.0
    %1298 = vmatpush1.msra.mxu0 0.0
    %1299 = vmatprep.subr.mxu0 0.0
    %1300 = vmatpush1.msra.mxu0 0.0
    %1301 = vmatprep.subr.mxu0 0.0
    %1302 = vmatpush1.msra.mxu0 0.0
    %1303 = vmatprep.subr.mxu0 0.0
    %1304 = vmatpush1.msra.mxu0 0.0
    %1305 = vmatprep.subr.mxu0 0.0
    %1306 = vmatpush1.msra.mxu0 0.0
    %1307 = vmatprep.subr.mxu0 0.0
    %1308 = vmatpush1.msra.mxu0 0.0
    %1309 = vmatprep.subr.mxu0 0.0
    %1310 = vmatpush1.msra.mxu0 0.0
    %1311 = vmatprep.mubr.f32.mxu0 0.0
    %1312 = vmatmul.mubr.f32.gmra.mrb[0].mxu0 %v1233
    %v1313 = vpop.f32.mrb[0].mxu0
    %v1314 = vadd.f32 0.0, %v1313
    %v1315 = vpop.f32.mrb[0].mxu0
    %1316 = vmatprep.mubr.f32.mxu0 0.0
    %1317 = vmatmul.mubr.f32.gmra.mrb[0].mxu0 %v1236
    %v1318 = vpop.f32.mrb[0].mxu0
    %v1319 = vadd.f32 0.0, %v1318
    %v1320 = vpop.f32.mrb[0].mxu0
    %1321 = vmatprep.mubr.f32.mxu0 0.0
    %1322 = vmatmul.mubr.f32.gmra.mrb[0].mxu0 %v1239
    %v1323 = vpop.f32.mrb[0].mxu0
    %v1324 = vadd.f32 0.0, %v1323
    %v1325 = vpop.f32.mrb[0].mxu0
    %1326 = vmatprep.mubr.f32.mxu0 0.0
    %1327 = vmatmul.mubr.f32.gmra.mrb[0].mxu0 %v1242
    %v1328 = vpop.f32.mrb[0].mxu0
    %v1329 = vadd.f32 0.0, %v1328
    %v1330 = vpop.f32.mrb[0].mxu0
    %1331 = vdwg.mxu0
    %1332 = vst.msk [vmem:[#allocation2 + $0x10] sm:$0xff] %vm406, %v1314
    %1333 = vst.msk [vmem:[#allocation2 + $0x18] sm:$0xff] %vm406, %v1319
    %1336 = vrot.lane.b32.xlu0 %v1324, 8
    %v1337 = vpop.permute.xlu0 %1336
    %1338 = vrot.lane.b32.xlu0 %v1329, 8
    %v1339 = vpop.permute.xlu0 %1338
    %1342 = vst.msk [vmem:[#allocation2 + $0x10] sm:$0xff] %vm659, %v1337
    %1343 = vst.msk [vmem:[#allocation2 + $0x18] sm:$0xff] %vm659, %v1339
    %1344 = vrot.lane.b32.xlu0 %v237, 112
    %v1345 = vpop.permute.xlu0 %1344
    %1346 = vrot.lane.b32.xlu0 %v238, 112
    %v1347 = vpop.permute.xlu0 %1346
    %1348 = vrot.lane.b32.xlu0 %v1089, 112
    %v1349 = vpop.permute.xlu0 %1348
    %1350 = vrot.lane.b32.xlu0 %v1091, 112
    %v1351 = vpop.permute.xlu0 %1350
    %1352 = vrot.lane.b32.xlu0 %v1009, 120
    %v1353 = vpop.permute.xlu0 %1352
    %v1354 = vsel %vm406, %v1345, 0
    %v1356 = vsel %vm406, %v1347, 0
    %v1358 = vsel %vm406, %v1349, 0
    %v1360 = vsel %vm406, %v1351, 0
    %v1362 = vsel %vm406, %v1353, 0
    %1364 = vmatprep.subr.mxu0 0.0
    %1365 = vmatpush1.xpose.msra.mxu0 %v1362
    %1366 = vmatprep.subr.mxu0 0.0
    %1367 = vmatpush1.xpose.msra.mxu0 0.0
    %1368 = vmatprep.subr.mxu0 0.0
    %1369 = vmatpush1.xpose.msra.mxu0 0.0
    %1370 = vmatprep.subr.mxu0 0.0
    %1371 = vmatpush1.xpose.msra.mxu0 0.0
    %1372 = vmatprep.subr.mxu0 0.0
    %1373 = vmatpush1.xpose.msra.mxu0 0.0
    %1374 = vmatprep.subr.mxu0 0.0
    %1375 = vmatpush1.xpose.msra.mxu0 0.0
    %1376 = vmatprep.subr.mxu0 0.0
    %1377 = vmatpush1.xpose.msra.mxu0 0.0
    %1378 = vmatprep.subr.mxu0 0.0
    %1379 = vmatpush1.xpose.msra.mxu0 0.0
    %1380 = vmatprep.subr.mxu0 0.0
    %1381 = vmatpush1.xpose.msra.mxu0 0.0
    %1382 = vmatprep.subr.mxu0 0.0
    %1383 = vmatpush1.xpose.msra.mxu0 0.0
    %1384 = vmatprep.subr.mxu0 0.0
    %1385 = vmatpush1.xpose.msra.mxu0 0.0
    %1386 = vmatprep.subr.mxu0 0.0
    %1387 = vmatpush1.xpose.msra.mxu0 0.0
    %1388 = vmatprep.subr.mxu0 0.0
    %1389 = vmatpush1.xpose.msra.mxu0 0.0
    %1390 = vmatprep.subr.mxu0 0.0
    %1391 = vmatpush1.xpose.msra.mxu0 0.0
    %1392 = vmatprep.subr.mxu0 0.0
    %1393 = vmatpush1.xpose.msra.mxu0 0.0
    %1394 = vmatprep.subr.mxu0 0.0
    %1395 = vmatpush1.xpose.msra.mxu0 0.0
    %1396 = vmatprep.subr.mxu0 0.0
    %1397 = vmatpush1.xpose.msra.mxu0 0.0
    %1398 = vmatprep.subr.mxu0 0.0
    %1399 = vmatpush1.xpose.msra.mxu0 0.0
    %1400 = vmatprep.subr.mxu0 0.0
    %1401 = vmatpush1.xpose.msra.mxu0 0.0
    %1402 = vmatprep.subr.mxu0 0.0
    %1403 = vmatpush1.xpose.msra.mxu0 0.0
    %1404 = vmatprep.subr.mxu0 0.0
    %1405 = vmatpush1.xpose.msra.mxu0 0.0
    %1406 = vmatprep.subr.mxu0 0.0
    %1407 = vmatpush1.xpose.msra.mxu0 0.0
    %1408 = vmatprep.subr.mxu0 0.0
    %1409 = vmatpush1.xpose.msra.mxu0 0.0
    %1410 = vmatprep.subr.mxu0 0.0
    %1411 = vmatpush1.xpose.msra.mxu0 0.0
    %1412 = vmatprep.subr.mxu0 0.0
    %1413 = vmatpush1.xpose.msra.mxu0 0.0
    %1414 = vmatprep.subr.mxu0 0.0
    %1415 = vmatpush1.xpose.msra.mxu0 0.0
    %1416 = vmatprep.subr.mxu0 0.0
    %1417 = vmatpush1.xpose.msra.mxu0 0.0
    %1418 = vmatprep.subr.mxu0 0.0
    %1419 = vmatpush1.xpose.msra.mxu0 0.0
    %1420 = vmatprep.subr.mxu0 0.0
    %1421 = vmatpush1.xpose.msra.mxu0 0.0
    %1422 = vmatprep.subr.mxu0 0.0
    %1423 = vmatpush1.xpose.msra.mxu0 0.0
    %1424 = vmatprep.subr.mxu0 0.0
    %1425 = vmatpush1.xpose.msra.mxu0 0.0
    %1426 = vmatprep.subr.mxu0 0.0
    %1427 = vmatpush1.xpose.msra.mxu0 0.0
    %1428 = vmatprep.mubr.f32.mxu0 0.0
    %1429 = vmatmul.mubr.f32.gmra.mrb[0].mxu0 %v1354
    %v1430 = vpop.f32.mrb[0].mxu0
    %v1431 = vadd.f32 0.0, %v1430
    %v1432 = vpop.f32.mrb[0].mxu0
    %1433 = vmatprep.mubr.f32.mxu0 0.0
    %1434 = vmatmul.mubr.f32.gmra.mrb[0].mxu0 %v1356
    %v1435 = vpop.f32.mrb[0].mxu0
    %v1436 = vadd.f32 0.0, %v1435
    %v1437 = vpop.f32.mrb[0].mxu0
    %1438 = vmatprep.mubr.f32.mxu0 0.0
    %1439 = vmatmul.mubr.f32.gmra.mrb[0].mxu0 %v1358
    %v1440 = vpop.f32.mrb[0].mxu0
    %v1441 = vadd.f32 0.0, %v1440
    %v1442 = vpop.f32.mrb[0].mxu0
    %1443 = vmatprep.mubr.f32.mxu0 0.0
    %1444 = vmatmul.mubr.f32.gmra.mrb[0].mxu0 %v1360
    %v1445 = vpop.f32.mrb[0].mxu0
    %v1446 = vadd.f32 0.0, %v1445
    %v1447 = vpop.f32.mrb[0].mxu0
    %1448 = vdwg.mxu0
    %v1449 = vsel %vm503, %v1431, -inf
    %1450 = vmax.xlane.f32.xlu0 %v1449
    %v1451 = vpop.xlane.xlu0 %1450
    %v1452 = vsel %vm503, %v1436, -inf
    %1453 = vmax.xlane.f32.xlu0 %v1452
    %v1454 = vpop.xlane.xlu0 %1453
    %v1455 = vsel %vm503, %v1441, -inf
    %1456 = vmax.xlane.f32.xlu0 %v1455
    %v1457 = vpop.xlane.xlu0 %1456
    %v1458 = vsel %vm503, %v1446, -inf
    %1459 = vmax.xlane.f32.xlu0 %v1458
    %v1460 = vpop.xlane.xlu0 %1459
    %v1461 = vsub.f32 %v1431, %v1451
    %v1462 = vsub.f32 %v1436, %v1454
    %v1463 = vsub.f32 %v1441, %v1457
    %v1464 = vsub.f32 %v1446, %v1460
    %v1465 = vmul.f32 %v1461, 1.442695
    %v1466 = vpow.pop %v1465
    %v1467 = vmul.f32 %v1462, 1.442695
    %v1468 = vpow.pop %v1467
    %v1469 = vmul.f32 %v1463, 1.442695
    %v1470 = vpow.pop %v1469
    %v1471 = vmul.f32 %v1464, 1.442695
    %v1472 = vpow.pop %v1471
    %v1473 = vsel %vm503, %v1466, 0.0
    %1474 = vadd.xlane.f32.xlu0 %v1473
    %v1475 = vpop.xlane.xlu0 %1474
    %v1476 = vsel %vm503, %v1468, 0.0
    %1477 = vadd.xlane.f32.xlu0 %v1476
    %v1478 = vpop.xlane.xlu0 %1477
    %v1479 = vsel %vm503, %v1470, 0.0
    %1480 = vadd.xlane.f32.xlu0 %v1479
    %v1481 = vpop.xlane.xlu0 %1480
    %v1482 = vsel %vm503, %v1472, 0.0
    %1483 = vadd.xlane.f32.xlu0 %v1482
    %v1484 = vpop.xlane.xlu0 %1483
    %v1485 = vrcp.pop %v1475
    %v1486 = vrcp.pop %v1478
    %v1487 = vrcp.pop %v1481
    %v1488 = vrcp.pop %v1484
    %v1489 = vmul.f32 %v1466, %v1485
    %v1490 = vmul.f32 %v1468, %v1486
    %v1491 = vmul.f32 %v1470, %v1487
    %v1492 = vmul.f32 %v1472, %v1488
    %1493 = vrot.lane.b32.xlu0 %v1085, 120
    %v1494 = vpop.permute.xlu0 %1493
    %v1496 = vsel %vm503, %v1489, 0
    %v1499 = vsel %vm503, %v1490, 0
    %v1502 = vsel %vm503, %v1491, 0
    %v1505 = vsel %vm503, %v1492, 0
    %v1507 = vsel %vm560, %v1494, 0
    %1509 = vmatprep.subr.mxu0 0.0
    %1510 = vmatpush1.msra.mxu0 %v1507
    %1511 = vmatprep.subr.mxu0 0.0
    %1512 = vmatpush1.msra.mxu0 0.0
    %1513 = vmatprep.subr.mxu0 0.0
    %1514 = vmatpush1.msra.mxu0 0.0
    %1515 = vmatprep.subr.mxu0 0.0
    %1516 = vmatpush1.msra.mxu0 0.0
    %1517 = vmatprep.subr.mxu0 0.0
    %1518 = vmatpush1.msra.mxu0 0.0
    %1519 = vmatprep.subr.mxu0 0.0
    %1520 = vmatpush1.msra.mxu0 0.0
    %1521 = vmatprep.subr.mxu0 0.0
    %1522 = vmatpush1.msra.mxu0 0.0
    %1523 = vmatprep.subr.mxu0 0.0
    %1524 = vmatpush1.msra.mxu0 0.0
    %1525 = vmatprep.subr.mxu0 0.0
    %1526 = vmatpush1.msra.mxu0 0.0
    %1527 = vmatprep.subr.mxu0 0.0
    %1528 = vmatpush1.msra.mxu0 0.0
    %1529 = vmatprep.subr.mxu0 0.0
    %1530 = vmatpush1.msra.mxu0 0.0
    %1531 = vmatprep.subr.mxu0 0.0
    %1532 = vmatpush1.msra.mxu0 0.0
    %1533 = vmatprep.subr.mxu0 0.0
    %1534 = vmatpush1.msra.mxu0 0.0
    %1535 = vmatprep.subr.mxu0 0.0
    %1536 = vmatpush1.msra.mxu0 0.0
    %1537 = vmatprep.subr.mxu0 0.0
    %1538 = vmatpush1.msra.mxu0 0.0
    %1539 = vmatprep.subr.mxu0 0.0
    %1540 = vmatpush1.msra.mxu0 0.0
    %1541 = vmatprep.subr.mxu0 0.0
    %1542 = vmatpush1.msra.mxu0 0.0
    %1543 = vmatprep.subr.mxu0 0.0
    %1544 = vmatpush1.msra.mxu0 0.0
    %1545 = vmatprep.subr.mxu0 0.0
    %1546 = vmatpush1.msra.mxu0 0.0
    %1547 = vmatprep.subr.mxu0 0.0
    %1548 = vmatpush1.msra.mxu0 0.0
    %1549 = vmatprep.subr.mxu0 0.0
    %1550 = vmatpush1.msra.mxu0 0.0
    %1551 = vmatprep.subr.mxu0 0.0
    %1552 = vmatpush1.msra.mxu0 0.0
    %1553 = vmatprep.subr.mxu0 0.0
    %1554 = vmatpush1.msra.mxu0 0.0
    %1555 = vmatprep.subr.mxu0 0.0
    %1556 = vmatpush1.msra.mxu0 0.0
    %1557 = vmatprep.subr.mxu0 0.0
    %1558 = vmatpush1.msra.mxu0 0.0
    %1559 = vmatprep.subr.mxu0 0.0
    %1560 = vmatpush1.msra.mxu0 0.0
    %1561 = vmatprep.subr.mxu0 0.0
    %1562 = vmatpush1.msra.mxu0 0.0
    %1563 = vmatprep.subr.mxu0 0.0
    %1564 = vmatpush1.msra.mxu0 0.0
    %1565 = vmatprep.subr.mxu0 0.0
    %1566 = vmatpush1.msra.mxu0 0.0
    %1567 = vmatprep.subr.mxu0 0.0
    %1568 = vmatpush1.msra.mxu0 0.0
    %1569 = vmatprep.subr.mxu0 0.0
    %1570 = vmatpush1.msra.mxu0 0.0
    %1571 = vmatprep.subr.mxu0 0.0
    %1572 = vmatpush1.msra.mxu0 0.0
    %1573 = vmatprep.mubr.f32.mxu0 0.0
    %1574 = vmatmul.mubr.f32.gmra.mrb[0].mxu0 %v1496
    %v1575 = vpop.f32.mrb[0].mxu0
    %v1576 = vadd.f32 0.0, %v1575
    %v1577 = vpop.f32.mrb[0].mxu0
    %1578 = vmatprep.mubr.f32.mxu0 0.0
    %1579 = vmatmul.mubr.f32.gmra.mrb[0].mxu0 %v1499
    %v1580 = vpop.f32.mrb[0].mxu0
    %v1581 = vadd.f32 0.0, %v1580
    %v1582 = vpop.f32.mrb[0].mxu0
    %1583 = vmatprep.mubr.f32.mxu0 0.0
    %1584 = vmatmul.mubr.f32.gmra.mrb[0].mxu0 %v1502
    %v1585 = vpop.f32.mrb[0].mxu0
    %v1586 = vadd.f32 0.0, %v1585
    %v1587 = vpop.f32.mrb[0].mxu0
    %1588 = vmatprep.mubr.f32.mxu0 0.0
    %1589 = vmatmul.mubr.f32.gmra.mrb[0].mxu0 %v1505
    %v1590 = vpop.f32.mrb[0].mxu0
    %v1591 = vadd.f32 0.0, %v1590
    %v1592 = vpop.f32.mrb[0].mxu0
    %1593 = vdwg.mxu0
    %1596 = vrot.lane.b32.xlu0 %v1576, 16
    %v1597 = vpop.permute.xlu0 %1596
    %1598 = vrot.lane.b32.xlu0 %v1581, 16
    %v1599 = vpop.permute.xlu0 %1598
    %1602 = vst.msk [vmem:[#allocation2 + $0x10] sm:$0xff] %vm920, %v1597
    %1603 = vst.msk [vmem:[#allocation2 + $0x18] sm:$0xff] %vm920, %v1599
    %1606 = vrot.lane.b32.xlu0 %v1586, 24
    %v1607 = vpop.permute.xlu0 %1606
    %1608 = vrot.lane.b32.xlu0 %v1591, 24
    %v1609 = vpop.permute.xlu0 %1608
    %1612 = vst.msk [vmem:[#allocation2 + $0x10] sm:$0xff] %vm931, %v1607
    %1613 = vst.msk [vmem:[#allocation2 + $0x18] sm:$0xff] %vm931, %v1609
    %v1614 = vld [vmem:[#allocation2] sm:$0xff]
    %v1615 = vld [vmem:[#allocation2 + $0x8] sm:$0xff]
    %v1616 = vld [vmem:[#allocation2 + $0x10] sm:$0xff]
    %v1617 = vld [vmem:[#allocation2 + $0x18] sm:$0xff]
    %v1618 = vld [vmem:[#allocation9] sm:$0xff]
    %v1619 = vld [vmem:[#allocation9 + $0x8] sm:$0xff]
    %v1620 = vld [vmem:[#allocation9 + $0x10] sm:$0xff]
    %v1621 = vld [vmem:[#allocation9 + $0x18] sm:$0xff]
    %v1623 = vsel %vm89, %v1614, 0
    %v1626 = vsel %vm89, %v1615, 0
    %v1629 = vsel %vm89, %v1616, 0
    %v1632 = vsel %vm89, %v1617, 0
    %1634 = vmatprep.subr.mxu0 0.0
    %1635 = vmatpush1.msra.mxu0 %v1618
    %1636 = vmatprep.subr.mxu0 0.0
    %1637 = vmatpush1.msra.mxu0 %v1619
    %1638 = vmatprep.subr.mxu0 0.0
    %1639 = vmatpush1.msra.mxu0 %v1620
    %1640 = vmatprep.subr.mxu0 0.0
    %1641 = vmatpush1.msra.mxu0 %v1621
    %1642 = vmatprep.subr.mxu0 0.0
    %1643 = vmatpush1.msra.mxu0 0.0
    %1644 = vmatprep.subr.mxu0 0.0
    %1645 = vmatpush1.msra.mxu0 0.0
    %1646 = vmatprep.subr.mxu0 0.0
    %1647 = vmatpush1.msra.mxu0 0.0
    %1648 = vmatprep.subr.mxu0 0.0
    %1649 = vmatpush1.msra.mxu0 0.0
    %1650 = vmatprep.subr.mxu0 0.0
    %1651 = vmatpush1.msra.mxu0 0.0
    %1652 = vmatprep.subr.mxu0 0.0
    %1653 = vmatpush1.msra.mxu0 0.0
    %1654 = vmatprep.subr.mxu0 0.0
    %1655 = vmatpush1.msra.mxu0 0.0
    %1656 = vmatprep.subr.mxu0 0.0
    %1657 = vmatpush1.msra.mxu0 0.0
    %1658 = vmatprep.subr.mxu0 0.0
    %1659 = vmatpush1.msra.mxu0 0.0
    %1660 = vmatprep.subr.mxu0 0.0
    %1661 = vmatpush1.msra.mxu0 0.0
    %1662 = vmatprep.subr.mxu0 0.0
    %1663 = vmatpush1.msra.mxu0 0.0
    %1664 = vmatprep.subr.mxu0 0.0
    %1665 = vmatpush1.msra.mxu0 0.0
    %1666 = vmatprep.subr.mxu0 0.0
    %1667 = vmatpush1.msra.mxu0 0.0
    %1668 = vmatprep.subr.mxu0 0.0
    %1669 = vmatpush1.msra.mxu0 0.0
    %1670 = vmatprep.subr.mxu0 0.0
    %1671 = vmatpush1.msra.mxu0 0.0
    %1672 = vmatprep.subr.mxu0 0.0
    %1673 = vmatpush1.msra.mxu0 0.0
    %1674 = vmatprep.subr.mxu0 0.0
    %1675 = vmatpush1.msra.mxu0 0.0
    %1676 = vmatprep.subr.mxu0 0.0
    %1677 = vmatpush1.msra.mxu0 0.0
    %1678 = vmatprep.subr.mxu0 0.0
    %1679 = vmatpush1.msra.mxu0 0.0
    %1680 = vmatprep.subr.mxu0 0.0
    %1681 = vmatpush1.msra.mxu0 0.0
    %1682 = vmatprep.subr.mxu0 0.0
    %1683 = vmatpush1.msra.mxu0 0.0
    %1684 = vmatprep.subr.mxu0 0.0
    %1685 = vmatpush1.msra.mxu0 0.0
    %1686 = vmatprep.subr.mxu0 0.0
    %1687 = vmatpush1.msra.mxu0 0.0
    %1688 = vmatprep.subr.mxu0 0.0
    %1689 = vmatpush1.msra.mxu0 0.0
    %1690 = vmatprep.subr.mxu0 0.0
    %1691 = vmatpush1.msra.mxu0 0.0
    %1692 = vmatprep.subr.mxu0 0.0
    %1693 = vmatpush1.msra.mxu0 0.0
    %1694 = vmatprep.subr.mxu0 0.0
    %1695 = vmatpush1.msra.mxu0 0.0
    %1696 = vmatprep.subr.mxu0 0.0
    %1697 = vmatpush1.msra.mxu0 0.0
    %1698 = vmatprep.mubr.f32.mxu0 0.0
    %1699 = vmatmul.mubr.f32.gmra.mrb[0].mxu0 %v1623
    %v1700 = vpop.f32.mrb[0].mxu0
    %v1701 = vadd.f32 0.0, %v1700
    %v1702 = vpop.f32.mrb[0].mxu0
    %1703 = vmatprep.mubr.f32.mxu0 0.0
    %1704 = vmatmul.mubr.f32.gmra.mrb[0].mxu0 %v1626
    %v1705 = vpop.f32.mrb[0].mxu0
    %v1706 = vadd.f32 0.0, %v1705
    %v1707 = vpop.f32.mrb[0].mxu0
    %1708 = vmatprep.mubr.f32.mxu0 0.0
    %1709 = vmatmul.mubr.f32.gmra.mrb[0].mxu0 %v1629
    %v1710 = vpop.f32.mrb[0].mxu0
    %v1711 = vadd.f32 0.0, %v1710
    %v1712 = vpop.f32.mrb[0].mxu0
    %1713 = vmatprep.mubr.f32.mxu0 0.0
    %1714 = vmatmul.mubr.f32.gmra.mrb[0].mxu0 %v1632
    %v1715 = vpop.f32.mrb[0].mxu0
    %v1716 = vadd.f32 0.0, %v1715
    %v1717 = vpop.f32.mrb[0].mxu0
    %1718 = vdwg.mxu0
    %1719 = vst.msk [vmem:[#allocation11] sm:$0xff] %vm89, %v1701
    %1720 = vst.msk [vmem:[#allocation11 + $0x8] sm:$0xff] %vm89, %v1706
    %1721 = vst.msk [vmem:[#allocation11 + $0x10] sm:$0xff] %vm89, %v1711
    %1722 = vst.msk [vmem:[#allocation11 + $0x18] sm:$0xff] %vm89, %v1716
    // Predicated region
    $region38: #{tpu_custom_call.1} parent=1 // pred_check
      _
    $region39: #{tpu_custom_call.1} parent=1 // pred_check_branch
      %1724 = sbr.rel (0) target = $region41
    $region40: #{tpu_custom_call.1} parent=1 // pred_region
      %s1726 = ssub.s32 512, 512
      %1727 = vsyncadd [#allocation5], %s1726
      %s1728 = sshll.u32 [#allocation11], 4
      %s1729 = int_to_ptr.vmem [resolvable:$true] %s1728
      %1734 = dma.vmem_to_hbm [thread:$0]  %s1729, 512, %s5, [#allocation5], 128, 128, 8
    $region41: #{tpu_custom_call.1} parent=1 // pred_fallthru
      _
    // Predicated region
    $region42: #{tpu_custom_call.1} parent=1 // pred_check
      _
    $region43: #{tpu_custom_call.1} parent=1 // pred_check_branch
      %1736 = sbr.rel (0) target = $region45
    $region44: #{tpu_custom_call.1} parent=1 // pred_region
      %1737 = dma.done [#allocation5], 512
    $region45: #{tpu_custom_call.1} parent=1 // pred_fallthru
      _
    %1738 = vsyncpa [#allocation4], 1
    %1739 = vsyncpa [#allocation7], 1
    %1740 = vsyncpa [#allocation10], 1
    %1741 = vsyncpa [#allocation5], 1

</llo_original>
